<compile_context>
chip_gen: v7x
topology: tpu7x:2x2x1
jax: 0.10.0
libtpu: 0.0.40
codegen_flags: <defaults>
</compile_context>

<pallas_src>
import jax
import jax.numpy as jnp
from jax.experimental import pallas as pl
from jax.experimental.pallas import tpu as pltpu


def _round_up(n, m):
    return ((n + m - 1) // m) * m


def _tpu_generation():
    """Best-effort TPU generation detection (5, 6, 7); defaults to 6."""
    try:
        kind = jax.devices()[0].device_kind.lower()
        for g in (7, 6, 5, 4):
            if f"v{g}" in kind:
                return g
    except Exception:
        pass
    return 6


def _inv_dyn_kernel(x_ref, w1_ref, b1_ref, w2_ref, b2_ref, w3_ref, b3_ref, o_ref):
    cdt = w1_ref.dtype  # streaming dtype fed to the next dot (bf16)
    # Layer 1: Linear(2h -> h) + ReLU   (MXU accumulates in f32)
    h1 = jnp.dot(x_ref[...], w1_ref[...], preferred_element_type=jnp.float32)
    h1 = jnp.maximum(h1.astype(b1_ref.dtype) + b1_ref[...], 0).astype(cdt)
    # Layer 2: Linear(h -> h) + ReLU
    h2 = jnp.dot(h1, w2_ref[...], preferred_element_type=jnp.float32)
    h2 = jnp.maximum(h2.astype(b2_ref.dtype) + b2_ref[...], 0).astype(cdt)
    # Layer 3: Linear(h -> action_size), lane-padded output
    out = jnp.dot(h2, w3_ref[...], preferred_element_type=jnp.float32)
    o_ref[...] = (out + b3_ref[...].astype(jnp.float32)).astype(o_ref.dtype)


def inv_dynamics_forward(x, params, *, block_b=None,
                         compute_dtype=jnp.bfloat16, out_dtype=jnp.bfloat16):
    """x: (B, 2*h_size). params: dict of pre-transposed weights/biases (f32 masters)."""
    B, in_dim = x.shape
    h_size = params["w1"].shape[1]
    action_size = params["w3"].shape[1]
    gen = _tpu_generation()

    cbytes = jnp.dtype(compute_dtype).itemsize
    obytes = jnp.dtype(out_dtype).itemsize

    # Epilogue dtype: bf16 VPU exists on v6e/v7x; v5e does bias-add/ReLU in f32.
    ep_dtype = compute_dtype if gen >= 6 else jnp.float32
    ep_bytes = jnp.dtype(ep_dtype).itemsize

    # --- lane padding (exact: padded cols/rows are zero, ReLU(0)=0) ---
    lane_mult = 256 if gen >= 6 else 128        # v6e/v7x MXU is 2x256x256
    in_pad = _round_up(in_dim, lane_mult)
    h_pad = _round_up(h_size, lane_mult)
    a_pad = _round_up(action_size, 128)

    xc = x.astype(compute_dtype)
    if in_pad != in_dim:
        xc = jnp.pad(xc, ((0, 0), (0, in_pad - in_dim)))
    w1 = jnp.pad(params["w1"].astype(compute_dtype),
                 ((0, in_pad - in_dim), (0, h_pad - h_size)))
    w2 = jnp.pad(params["w2"].astype(compute_dtype),
                 ((0, h_pad - h_size), (0, h_pad - h_size)))
    w3 = jnp.pad(params["w3"].astype(compute_dtype),
                 ((0, h_pad - h_size), (0, a_pad - action_size)))
    b1 = jnp.pad(params["b1"].astype(ep_dtype), ((0, 0), (0, h_pad - h_size)))
    b2 = jnp.pad(params["b2"].astype(ep_dtype), ((0, 0), (0, h_pad - h_size)))
    b3 = jnp.pad(params["b3"].astype(jnp.float32), ((0, 0), (0, a_pad - action_size)))

    # --- batch tiling: bounded, sublane-aligned block; zero-pad ragged batches ---
    sub_align = 16 if cbytes == 2 else 8
    if block_b is None:
        block_b = 512 if gen >= 7 else 1024     # v7x has 64 MiB VMEM per TensorCore
    block_b = _round_up(max(sub_align, block_b), sub_align)
    B_aligned = _round_up(B, sub_align)
    # Guarantee >=2 grid steps when possible so the "parallel" batch axis can be
    # sharded across both v7x TensorCores.
    if B_aligned <= 2 * block_b:
        block_b = max(sub_align, _round_up(pl.cdiv(B_aligned, 2), sub_align))

    # --- VMEM budgeting (per TensorCore; assume double-buffered weights as the
    #     conservative case so the Buffered(1) fallback path also fits) ---
    x_bufs = 3 if gen <= 5 else 2               # deeper x buffering on v5e

    def vmem_budget(bb):
        weights = (in_pad * h_pad + h_pad * h_pad + h_pad * a_pad) * cbytes * 2
        biases = (2 * h_pad * ep_bytes + a_pad * 4) * 2
        x_tiles = x_bufs * bb * in_pad * cbytes
        o_tiles = 2 * bb * a_pad * obytes
        inter = 3 * bb * h_pad * 4              # f32 dot results + casted copies
        return weights + biases + x_tiles + o_tiles + inter

    budget_cap = (48 << 20) if gen >= 7 else (100 << 20)
    while block_b > sub_align and vmem_budget(block_b) > budget_cap:
        block_b = max(sub_align, _round_up(block_b // 2, sub_align))
    # TODO(synk): for very large h (resident weights alone near the VMEM cap), tile the
    # contraction dims with an extra "arbitrary" grid axis instead of shrinking block_b.

    B_pad = _round_up(B_aligned, block_b)
    if B_pad != B:
        xc = jnp.pad(xc, ((0, B_pad - B), (0, 0)))
    grid = (B_pad // block_b,)

    vmem_limit = min((56 << 20) if gen >= 7 else (112 << 20),
                     max(32 << 20, int(vmem_budget(block_b) * 1.25) + (2 << 20)))

    # --- advisory cost estimate for the XLA scheduler ---
    flops = 2 * B_pad * (in_pad * h_pad + h_pad * h_pad + h_pad * a_pad)
    bytes_accessed = (
        B_pad * in_pad * cbytes                                          # x stream
        + B_pad * a_pad * obytes                                         # output stream
        + (in_pad * h_pad + h_pad * h_pad + h_pad * a_pad) * cbytes      # weights
        + 2 * h_pad * ep_bytes + a_pad * 4                               # biases
    )
    cost = pl.CostEstimate(flops=flops, transcendentals=0,
                           bytes_accessed=bytes_accessed)

    def call(weight_mode, x_mode):
        def wspec(shape):
            if weight_mode is None:
                return pl.BlockSpec(shape, lambda i: (0, 0))
            return pl.BlockSpec(shape, lambda i: (0, 0), pipeline_mode=weight_mode)

        if x_mode is None:
            x_spec = pl.BlockSpec((block_b, in_pad), lambda i: (i, 0))
        else:
            x_spec = pl.BlockSpec((block_b, in_pad), lambda i: (i, 0),
                                  pipeline_mode=x_mode)

        return pl.pallas_call(
            _inv_dyn_kernel,
            out_shape=jax.ShapeDtypeStruct((B_pad, a_pad), out_dtype),
            grid_spec=pltpu.PrefetchScalarGridSpec(
                num_scalar_prefetch=0,
                grid=grid,
                in_specs=[
                    x_spec,                      # x tile (pipelined)
                    wspec(w1.shape),             # w1 (resident)
                    wspec(b1.shape),             # b1
                    wspec(w2.shape),             # w2
                    wspec(b2.shape),             # b2
                    wspec(w3.shape),             # w3 (lane-padded)
                    wspec(b3.shape),             # b3 (lane-padded)
                ],
                out_specs=pl.BlockSpec((block_b, a_pad), lambda i: (i, 0)),
            ),
            compiler_params=pltpu.CompilerParams(
                dimension_semantics=("parallel",),   # batch splits across TCs (v7x)
                vmem_limit_bytes=vmem_limit,
            ),
            cost_estimate=cost,
        )(xc, w1, b1, w2, b2, w3, b3)

    try:
        # Single-buffer the grid-invariant weights; deeper x buffering on v5e.
        out_padded = call(pl.Buffered(1), pl.Buffered(3) if gen <= 5 else None)
    except Exception:
        # Fallback for Pallas versions without pipeline_mode support.
        out_padded = call(None, None)

    # strip batch padding and lane padding
    return out_padded[:B, :action_size]


def init_params(key, h_size, action_size, dtype=jnp.float32):
    """Deterministic synthetic parameters (PyTorch Linear shapes, stored transposed)."""
    ks = jax.random.split(key, 6)

    def uniform(k, shape, fan_in):
        bound = 1.0 / jnp.sqrt(fan_in)
        return jax.random.uniform(k, shape, dtype, minval=-bound, maxval=bound)

    return {
        # nn.Linear(2h, h): weight (h, 2h) -> stored as (2h, h)
        "w1": uniform(ks[0], (2 * h_size, h_size), 2 * h_size),
        "b1": uniform(ks[1], (1, h_size), 2 * h_size),
        # nn.Linear(h, h)
        "w2": uniform(ks[2], (h_size, h_size), h_size),
        "b2": uniform(ks[3], (1, h_size), h_size),
        # nn.Linear(h, action_size)
        "w3": uniform(ks[4], (h_size, action_size), h_size),
        "b3": uniform(ks[5], (1, action_size), h_size),
    }


def _reference(x, p, compute_dtype=jnp.bfloat16):
    """f32 reference emulating the bf16 parameter/input quantization of the kernel."""
    f32 = jnp.float32
    xq = x.astype(compute_dtype).astype(f32)
    w1 = p["w1"].astype(compute_dtype).astype(f32)
    w2 = p["w2"].astype(compute_dtype).astype(f32)
    w3 = p["w3"].astype(compute_dtype).astype(f32)
    h1 = jnp.maximum(xq @ w1 + p["b1"].astype(f32), 0.0)
    h2 = jnp.maximum(h1 @ w2 + p["b2"].astype(f32), 0.0)
    return h2 @ w3 + p["b3"].astype(f32)


if __name__ == "__main__":
    h_size = 32
    action_size = 8
    batch = 8

    key = jax.random.PRNGKey(0)
    k_x, k_p = jax.random.split(key)

    x = jax.random.normal(k_x, (batch, 2 * h_size), dtype=jnp.float32)
    params = init_params(k_p, h_size, action_size)

    out = inv_dynamics_forward(x, params)
    out = jax.block_until_ready(out)

    ref = _reference(x, params)
    assert out.shape == (batch, action_size), out.shape
    # bf16 streaming, bf16 epilogues and bf16 output -> loosened tolerance vs f32 math
    assert jnp.allclose(out.astype(jnp.float32), ref, atol=4e-2, rtol=4e-2), \
        "mismatch vs reference"

    print("KERNEL_OK")
</pallas_src>

<mosaic_0001>
module attributes {stable_mosaic.version = 11 : i64} {
  func.func @_inv_dyn_kernel(%arg0: i32, %arg1: memref<16x256xbf16, #tpu.memory_space<vmem>>, %arg2: memref<256x256xbf16, #tpu.memory_space<vmem>>, %arg3: memref<1x256xbf16, #tpu.memory_space<vmem>>, %arg4: memref<256x256xbf16, #tpu.memory_space<vmem>>, %arg5: memref<1x256xbf16, #tpu.memory_space<vmem>>, %arg6: memref<256x128xbf16, #tpu.memory_space<vmem>>, %arg7: memref<1x128xf32, #tpu.memory_space<vmem>>, %arg8: memref<16x128xbf16, #tpu.memory_space<vmem>>) attributes {dimension_semantics = [#tpu.dimension_semantics<parallel>], iteration_bounds = array<i64: 1>, scalar_prefetch = 0 : i64, scratch_operands = 0 : i64, tpu.core_type = #tpu.core_type<tc>, window_params = [{transform_indices = @transform_0, window_bounds = array<i64: 16, 256>}, {pipeline_mode = #tpu.pipeline_mode<synchronous>, transform_indices = @transform_1, window_bounds = array<i64: 256, 256>}, {pipeline_mode = #tpu.pipeline_mode<synchronous>, transform_indices = @transform_2, window_bounds = array<i64: 1, 256>}, {pipeline_mode = #tpu.pipeline_mode<synchronous>, transform_indices = @transform_3, window_bounds = array<i64: 256, 256>}, {pipeline_mode = #tpu.pipeline_mode<synchronous>, transform_indices = @transform_4, window_bounds = array<i64: 1, 256>}, {pipeline_mode = #tpu.pipeline_mode<synchronous>, transform_indices = @transform_5, window_bounds = array<i64: 256, 128>}, {pipeline_mode = #tpu.pipeline_mode<synchronous>, transform_indices = @transform_6, window_bounds = array<i64: 1, 128>}, {transform_indices = @transform_7, window_bounds = array<i64: 16, 128>}]} {
    %c0 = arith.constant 0 : index
    %c0_0 = arith.constant 0 : index
    %0 = vector.load %arg1[%c0, %c0_0] : memref<16x256xbf16, #tpu.memory_space<vmem>>, vector<16x256xbf16>
    %c0_1 = arith.constant 0 : index
    %c0_2 = arith.constant 0 : index
    %1 = vector.load %arg2[%c0_1, %c0_2] : memref<256x256xbf16, #tpu.memory_space<vmem>>, vector<256x256xbf16>
    %cst = arith.constant dense<0.000000e+00> : vector<16x256xf32>
    %2 = tpu.matmul %0, %1, %cst {dimension_numbers = #tpu.dot_dimension_numbers<[1], [0], [0], [1], [0, 0, 1, 1], [], []>} : vector<16x256xbf16>, vector<256x256xbf16>, vector<16x256xf32> -> vector<16x256xf32>
    %3 = arith.truncf %2 : vector<16x256xf32> to vector<16x256xbf16>
    %c0_3 = arith.constant 0 : index
    %c0_4 = arith.constant 0 : index
    %4 = vector.load %arg3[%c0_3, %c0_4] : memref<1x256xbf16, #tpu.memory_space<vmem>>, vector<1x256xbf16>
    %5 = vector.broadcast %4 : vector<1x256xbf16> to vector<16x256xbf16>
    %6 = arith.addf %3, %5 : vector<16x256xbf16>
    %cst_5 = arith.constant 0.000000e+00 : bf16
    %7 = vector.broadcast %cst_5 : bf16 to vector<16x256xbf16>
    %8 = arith.maximumf %6, %7 : vector<16x256xbf16>
    %c0_6 = arith.constant 0 : index
    %c0_7 = arith.constant 0 : index
    %9 = vector.load %arg4[%c0_6, %c0_7] : memref<256x256xbf16, #tpu.memory_space<vmem>>, vector<256x256xbf16>
    %cst_8 = arith.constant dense<0.000000e+00> : vector<16x256xf32>
    %10 = tpu.matmul %8, %9, %cst_8 {dimension_numbers = #tpu.dot_dimension_numbers<[1], [0], [0], [1], [0, 0, 1, 1], [], []>} : vector<16x256xbf16>, vector<256x256xbf16>, vector<16x256xf32> -> vector<16x256xf32>
    %11 = arith.truncf %10 : vector<16x256xf32> to vector<16x256xbf16>
    %c0_9 = arith.constant 0 : index
    %c0_10 = arith.constant 0 : index
    %12 = vector.load %arg5[%c0_9, %c0_10] : memref<1x256xbf16, #tpu.memory_space<vmem>>, vector<1x256xbf16>
    %13 = vector.broadcast %12 : vector<1x256xbf16> to vector<16x256xbf16>
    %14 = arith.addf %11, %13 : vector<16x256xbf16>
    %cst_11 = arith.constant 0.000000e+00 : bf16
    %15 = vector.broadcast %cst_11 : bf16 to vector<16x256xbf16>
    %16 = arith.maximumf %14, %15 : vector<16x256xbf16>
    %c0_12 = arith.constant 0 : index
    %c0_13 = arith.constant 0 : index
    %17 = vector.load %arg6[%c0_12, %c0_13] : memref<256x128xbf16, #tpu.memory_space<vmem>>, vector<256x128xbf16>
    %cst_14 = arith.constant dense<0.000000e+00> : vector<16x128xf32>
    %18 = tpu.matmul %16, %17, %cst_14 {dimension_numbers = #tpu.dot_dimension_numbers<[1], [0], [0], [1], [0, 0, 1, 1], [], []>} : vector<16x256xbf16>, vector<256x128xbf16>, vector<16x128xf32> -> vector<16x128xf32>
    %c0_15 = arith.constant 0 : index
    %c0_16 = arith.constant 0 : index
    %19 = vector.load %arg7[%c0_15, %c0_16] : memref<1x128xf32, #tpu.memory_space<vmem>>, vector<1x128xf32>
    %20 = vector.broadcast %19 : vector<1x128xf32> to vector<16x128xf32>
    %21 = arith.addf %18, %20 : vector<16x128xf32>
    %22 = arith.truncf %21 : vector<16x128xf32> to vector<16x128xbf16>
    %c0_17 = arith.constant 0 : index
    %c0_18 = arith.constant 0 : index
    %23 = vector.load %arg8[%c0_17, %c0_18] : memref<16x128xbf16, #tpu.memory_space<vmem>>, vector<16x128xbf16>
    tpu.vector_store %arg8[%c0_17, %c0_18], %22 {strides = array<i32>} : memref<16x128xbf16, #tpu.memory_space<vmem>>, vector<16x128xbf16>,
    return
  }
  func.func @transform_0(%arg0: i32) -> (i32, i32) {
    %c0_i32 = arith.constant 0 : i32
    %c0_i32_0 = arith.constant 0 : i32
    return %arg0, %c0_i32 : i32, i32
  }
  func.func @transform_1(%arg0: i32) -> (i32, i32) {
    %c0_i32 = arith.constant 0 : i32
    %c0_i32_0 = arith.constant 0 : i32
    %c0_i32_1 = arith.constant 0 : i32
    return %c0_i32, %c0_i32_0 : i32, i32
  }
  func.func @transform_2(%arg0: i32) -> (i32, i32) {
    %c0_i32 = arith.constant 0 : i32
    %c0_i32_0 = arith.constant 0 : i32
    %c0_i32_1 = arith.constant 0 : i32
    return %c0_i32, %c0_i32_0 : i32, i32
  }
  func.func @transform_3(%arg0: i32) -> (i32, i32) {
    %c0_i32 = arith.constant 0 : i32
    %c0_i32_0 = arith.constant 0 : i32
    %c0_i32_1 = arith.constant 0 : i32
    return %c0_i32, %c0_i32_0 : i32, i32
  }
  func.func @transform_4(%arg0: i32) -> (i32, i32) {
    %c0_i32 = arith.constant 0 : i32
    %c0_i32_0 = arith.constant 0 : i32
    %c0_i32_1 = arith.constant 0 : i32
    return %c0_i32, %c0_i32_0 : i32, i32
  }
  func.func @transform_5(%arg0: i32) -> (i32, i32) {
    %c0_i32 = arith.constant 0 : i32
    %c0_i32_0 = arith.constant 0 : i32
    %c0_i32_1 = arith.constant 0 : i32
    return %c0_i32, %c0_i32_0 : i32, i32
  }
  func.func @transform_6(%arg0: i32) -> (i32, i32) {
    %c0_i32 = arith.constant 0 : i32
    %c0_i32_0 = arith.constant 0 : i32
    %c0_i32_1 = arith.constant 0 : i32
    return %c0_i32, %c0_i32_0 : i32, i32
  }
  func.func @transform_7(%arg0: i32) -> (i32, i32) {
    %c0_i32 = arith.constant 0 : i32
    %c0_i32_0 = arith.constant 0 : i32
    return %arg0, %c0_i32 : i32, i32
  }
}

module attributes {stable_mosaic.version = 11 : i64} {
  func.func @_inv_dyn_kernel(%arg0: i32, %arg1: memref<16x256xbf16, #tpu.memory_space<vmem>>, %arg2: memref<256x256xbf16, #tpu.memory_space<vmem>>, %arg3: memref<1x256xbf16, #tpu.memory_space<vmem>>, %arg4: memref<256x256xbf16, #tpu.memory_space<vmem>>, %arg5: memref<1x256xbf16, #tpu.memory_space<vmem>>, %arg6: memref<256x128xbf16, #tpu.memory_space<vmem>>, %arg7: memref<1x128xf32, #tpu.memory_space<vmem>>, %arg8: memref<16x128xbf16, #tpu.memory_space<vmem>>) attributes {dimension_semantics = [#tpu.dimension_semantics<parallel>], iteration_bounds = array<i64: 1>, scalar_prefetch = 0 : i64, scratch_operands = 0 : i64, tpu.core_type = #tpu.core_type<tc>, window_params = [{transform_indices = @transform_0, window_bounds = array<i64: 16, 256>}, {pipeline_mode = #tpu.pipeline_mode<synchronous>, transform_indices = @transform_1, window_bounds = array<i64: 256, 256>}, {pipeline_mode = #tpu.pipeline_mode<synchronous>, transform_indices = @transform_2, window_bounds = array<i64: 1, 256>}, {pipeline_mode = #tpu.pipeline_mode<synchronous>, transform_indices = @transform_3, window_bounds = array<i64: 256, 256>}, {pipeline_mode = #tpu.pipeline_mode<synchronous>, transform_indices = @transform_4, window_bounds = array<i64: 1, 256>}, {pipeline_mode = #tpu.pipeline_mode<synchronous>, transform_indices = @transform_5, window_bounds = array<i64: 256, 128>}, {pipeline_mode = #tpu.pipeline_mode<synchronous>, transform_indices = @transform_6, window_bounds = array<i64: 1, 128>}, {transform_indices = @transform_7, window_bounds = array<i64: 16, 128>}]} {
    %c0 = arith.constant 0 : index
    %c0_0 = arith.constant 0 : index
    %0 = vector.load %arg1[%c0, %c0_0] : memref<16x256xbf16, #tpu.memory_space<vmem>>, vector<16x256xbf16>
    %c0_1 = arith.constant 0 : index
    %c0_2 = arith.constant 0 : index
    %1 = vector.load %arg2[%c0_1, %c0_2] : memref<256x256xbf16, #tpu.memory_space<vmem>>, vector<256x256xbf16>
    %cst = arith.constant dense<0.000000e+00> : vector<16x256xf32>
    %2 = tpu.matmul %0, %1, %cst {dimension_numbers = #tpu.dot_dimension_numbers<[1], [0], [0], [1], [0, 0, 1, 1], [], []>} : vector<16x256xbf16>, vector<256x256xbf16>, vector<16x256xf32> -> vector<16x256xf32>
    %3 = arith.truncf %2 : vector<16x256xf32> to vector<16x256xbf16>
    %c0_3 = arith.constant 0 : index
    %c0_4 = arith.constant 0 : index
    %4 = vector.load %arg3[%c0_3, %c0_4] : memref<1x256xbf16, #tpu.memory_space<vmem>>, vector<1x256xbf16>
    %5 = vector.broadcast %4 : vector<1x256xbf16> to vector<16x256xbf16>
    %6 = arith.addf %3, %5 : vector<16x256xbf16>
    %cst_5 = arith.constant 0.000000e+00 : bf16
    %7 = vector.broadcast %cst_5 : bf16 to vector<16x256xbf16>
    %8 = arith.maximumf %6, %7 : vector<16x256xbf16>
    %c0_6 = arith.constant 0 : index
    %c0_7 = arith.constant 0 : index
    %9 = vector.load %arg4[%c0_6, %c0_7] : memref<256x256xbf16, #tpu.memory_space<vmem>>, vector<256x256xbf16>
    %cst_8 = arith.constant dense<0.000000e+00> : vector<16x256xf32>
    %10 = tpu.matmul %8, %9, %cst_8 {dimension_numbers = #tpu.dot_dimension_numbers<[1], [0], [0], [1], [0, 0, 1, 1], [], []>} : vector<16x256xbf16>, vector<256x256xbf16>, vector<16x256xf32> -> vector<16x256xf32>
    %11 = arith.truncf %10 : vector<16x256xf32> to vector<16x256xbf16>
    %c0_9 = arith.constant 0 : index
    %c0_10 = arith.constant 0 : index
    %12 = vector.load %arg5[%c0_9, %c0_10] : memref<1x256xbf16, #tpu.memory_space<vmem>>, vector<1x256xbf16>
    %13 = vector.broadcast %12 : vector<1x256xbf16> to vector<16x256xbf16>
    %14 = arith.addf %11, %13 : vector<16x256xbf16>
    %cst_11 = arith.constant 0.000000e+00 : bf16
    %15 = vector.broadcast %cst_11 : bf16 to vector<16x256xbf16>
    %16 = arith.maximumf %14, %15 : vector<16x256xbf16>
    %c0_12 = arith.constant 0 : index
    %c0_13 = arith.constant 0 : index
    %17 = vector.load %arg6[%c0_12, %c0_13] : memref<256x128xbf16, #tpu.memory_space<vmem>>, vector<256x128xbf16>
    %cst_14 = arith.constant dense<0.000000e+00> : vector<16x128xf32>
    %18 = tpu.matmul %16, %17, %cst_14 {dimension_numbers = #tpu.dot_dimension_numbers<[1], [0], [0], [1], [0, 0, 1, 1], [], []>} : vector<16x256xbf16>, vector<256x128xbf16>, vector<16x128xf32> -> vector<16x128xf32>
    %c0_15 = arith.constant 0 : index
    %c0_16 = arith.constant 0 : index
    %19 = vector.load %arg7[%c0_15, %c0_16] : memref<1x128xf32, #tpu.memory_space<vmem>>, vector<1x128xf32>
    %20 = vector.broadcast %19 : vector<1x128xf32> to vector<16x128xf32>
    %21 = arith.addf %18, %20 : vector<16x128xf32>
    %22 = arith.truncf %21 : vector<16x128xf32> to vector<16x128xbf16>
    %c0_17 = arith.constant 0 : index
    %c0_18 = arith.constant 0 : index
    %23 = vector.load %arg8[%c0_17, %c0_18] : memref<16x128xbf16, #tpu.memory_space<vmem>>, vector<16x128xbf16>
    tpu.vector_store %arg8[%c0_17, %c0_18], %22 {strides = array<i32>} : memref<16x128xbf16, #tpu.memory_space<vmem>>, vector<16x128xbf16>,
    return
  }
  func.func @transform_0(%arg0: i32) -> (i32, i32) {
    %c0_i32 = arith.constant 0 : i32
    %c0_i32_0 = arith.constant 0 : i32
    return %arg0, %c0_i32 : i32, i32
  }
  func.func @transform_1(%arg0: i32) -> (i32, i32) {
    %c0_i32 = arith.constant 0 : i32
    %c0_i32_0 = arith.constant 0 : i32
    %c0_i32_1 = arith.constant 0 : i32
    return %c0_i32, %c0_i32_0 : i32, i32
  }
  func.func @transform_2(%arg0: i32) -> (i32, i32) {
    %c0_i32 = arith.constant 0 : i32
    %c0_i32_0 = arith.constant 0 : i32
    %c0_i32_1 = arith.constant 0 : i32
    return %c0_i32, %c0_i32_0 : i32, i32
  }
  func.func @transform_3(%arg0: i32) -> (i32, i32) {
    %c0_i32 = arith.constant 0 : i32
    %c0_i32_0 = arith.constant 0 : i32
    %c0_i32_1 = arith.constant 0 : i32
    return %c0_i32, %c0_i32_0 : i32, i32
  }
  func.func @transform_4(%arg0: i32) -> (i32, i32) {
    %c0_i32 = arith.constant 0 : i32
    %c0_i32_0 = arith.constant 0 : i32
    %c0_i32_1 = arith.constant 0 : i32
    return %c0_i32, %c0_i32_0 : i32, i32
  }
  func.func @transform_5(%arg0: i32) -> (i32, i32) {
    %c0_i32 = arith.constant 0 : i32
    %c0_i32_0 = arith.constant 0 : i32
    %c0_i32_1 = arith.constant 0 : i32
    return %c0_i32, %c0_i32_0 : i32, i32
  }
  func.func @transform_6(%arg0: i32) -> (i32, i32) {
    %c0_i32 = arith.constant 0 : i32
    %c0_i32_0 = arith.constant 0 : i32
    %c0_i32_1 = arith.constant 0 : i32
    return %c0_i32, %c0_i32_0 : i32, i32
  }
  func.func @transform_7(%arg0: i32) -> (i32, i32) {
    %c0_i32 = arith.constant 0 : i32
    %c0_i32_0 = arith.constant 0 : i32
    return %arg0, %c0_i32 : i32, i32
  }
}

</mosaic_0001>

<llo_original>
// kernel: tpu_custom_call.1
$region0: #{tpu_custom_call.1}
  #allocation0 [shape = 'u32[]', space=smem, size = 0x4, offset = 0x4, fixed_abs, tag = 'smem constant byte address 0x4 - core index']
  #allocation1 [shape = 'u32[144,128]{1,0:T(1,128)}', space=vmem, size = 0x12000, scoped, tag = 'internal scratch']
  %s0 = inlined_call_operand.hbm [shape: bf16[16,256], index: 0, kind: input, shape index: {}]
  %s1 = inlined_call_operand.hbm [shape: bf16[256,256], index: 1, kind: input, shape index: {}]
  %s2 = inlined_call_operand.vmem [shape: bf16[1,256], index: 2, kind: input, shape index: {}]
  %s3 = inlined_call_operand.hbm [shape: bf16[256,256], index: 3, kind: input, shape index: {}]
  %s4 = inlined_call_operand.vmem [shape: bf16[1,256], index: 4, kind: input, shape index: {}]
  %s5 = inlined_call_operand.hbm [shape: bf16[256,128], index: 5, kind: input, shape index: {}]
  %s6 = inlined_call_operand.vmem [shape: f32[1,128], index: 6, kind: input, shape index: {}]
  %s7 = inlined_call_operand.hbm [shape: bf16[16,128], index: 7, kind: output, shape index: {}]
  %s8 = sld [smem:[#allocation0]]
  $region54: #{tpu_custom_call.1} parent=0
    _
  %s10 = ssub.s32 1, %s8
  %s11 = scalar_select 0, %s10, %s8
  $region1: #{tpu_custom_call.1} parent=0
    #allocation2 [shape = 'u8[8192]{0}', space=vmem, size = 0x2000, scoped, tag = 'input window, operand 0, single buffered']
    #allocation3 [shape = 's32[1]{0}', space=sflag, size = 0x4, scoped, tag = 'scoped memory for tpu_custom_call.1']
    #allocation4 [shape = 's32[1]{0}', space=sflag, size = 0x4, scoped, tag = 'scoped memory for tpu_custom_call.1']
    #allocation5 [shape = 'u8[131072]{0}', space=vmem, size = 0x20000, scoped, tag = 'input window, operand 1, single buffered']
    #allocation6 [shape = 's32[1]{0}', space=sflag, size = 0x4, scoped, tag = 'scoped memory for tpu_custom_call.1']
    #allocation7 [shape = 'u8[131072]{0}', space=vmem, size = 0x20000, scoped, tag = 'input window, operand 3, single buffered']
    #allocation8 [shape = 'u8[65536]{0}', space=vmem, size = 0x10000, scoped, tag = 'input window, operand 5, single buffered']
    #allocation9 [shape = 's32[1]{0}', space=sflag, size = 0x4, scoped, tag = 'scoped memory for tpu_custom_call.1']
    #allocation10 [shape = 'u8[4096]{0}', space=vmem, size = 0x1000, scoped, tag = 'output window, operand 0, single buffered']
    %12 = vsyncpa [#allocation3], 0
    %13 = vsyncpa [#allocation6], 0
    %14 = vsyncpa [#allocation9], 0
    %15 = vsyncpa [#allocation4], 0
    // Predicated region
    $region2: #{tpu_custom_call.1} parent=1 // pred_check
      _
    $region3: #{tpu_custom_call.1} parent=1 // pred_check_branch
      %17 = sbr.rel (0) target = $region5
    $region4: #{tpu_custom_call.1} parent=1 // pred_region
      %s19 = ssub.s32 256, 256
      %20 = vsyncadd [#allocation3], %s19
      %s21 = sshll.u32 [#allocation2], 4
      %s22 = int_to_ptr.vmem [resolvable:$true] %s21
      %27 = dma.hbm_to_vmem [thread:$0]  %s0, 256, %s22, [#allocation3], 128, 128, 8
    $region5: #{tpu_custom_call.1} parent=1 // pred_fallthru
      _
    // Predicated region
    $region6: #{tpu_custom_call.1} parent=1 // pred_check
      _
    $region7: #{tpu_custom_call.1} parent=1 // pred_check_branch
      %29 = sbr.rel (0) target = $region9
    $region8: #{tpu_custom_call.1} parent=1 // pred_region
      %s31 = ssub.s32 4096, 4096
      %32 = vsyncadd [#allocation6], %s31
      %s33 = sshll.u32 [#allocation5], 4
      %s34 = int_to_ptr.vmem [resolvable:$true] %s33
      %39 = dma.hbm_to_vmem [thread:$0]  %s1, 4096, %s34, [#allocation6], 128, 128, 8
    $region9: #{tpu_custom_call.1} parent=1 // pred_fallthru
      _
    // Predicated region
    $region10: #{tpu_custom_call.1} parent=1 // pred_check
      _
    $region11: #{tpu_custom_call.1} parent=1 // pred_check_branch
      %41 = sbr.rel (0) target = $region13
    $region12: #{tpu_custom_call.1} parent=1 // pred_region
      _
    $region13: #{tpu_custom_call.1} parent=1 // pred_fallthru
      _
    // Predicated region
    $region14: #{tpu_custom_call.1} parent=1 // pred_check
      _
    $region15: #{tpu_custom_call.1} parent=1 // pred_check_branch
      %43 = sbr.rel (0) target = $region17
    $region16: #{tpu_custom_call.1} parent=1 // pred_region
      %s45 = ssub.s32 4096, 4096
      %46 = vsyncadd [#allocation6], %s45
      %s47 = sshll.u32 [#allocation7], 4
      %s48 = int_to_ptr.vmem [resolvable:$true] %s47
      %53 = dma.hbm_to_vmem [thread:$0]  %s3, 4096, %s48, [#allocation6], 128, 128, 8
    $region17: #{tpu_custom_call.1} parent=1 // pred_fallthru
      _
    // Predicated region
    $region18: #{tpu_custom_call.1} parent=1 // pred_check
      _
    $region19: #{tpu_custom_call.1} parent=1 // pred_check_branch
      %55 = sbr.rel (0) target = $region21
    $region20: #{tpu_custom_call.1} parent=1 // pred_region
      _
    $region21: #{tpu_custom_call.1} parent=1 // pred_fallthru
      _
    // Predicated region
    $region22: #{tpu_custom_call.1} parent=1 // pred_check
      _
    $region23: #{tpu_custom_call.1} parent=1 // pred_check_branch
      %57 = sbr.rel (0) target = $region25
    $region24: #{tpu_custom_call.1} parent=1 // pred_region
      %s59 = ssub.s32 2048, 2048
      %60 = vsyncadd [#allocation9], %s59
      %s61 = sshll.u32 [#allocation8], 4
      %s62 = int_to_ptr.vmem [resolvable:$true] %s61
      %67 = dma.hbm_to_vmem [thread:$0]  %s5, 2048, %s62, [#allocation9], 64, 64, 4
    $region25: #{tpu_custom_call.1} parent=1 // pred_fallthru
      _
    // Predicated region
    $region26: #{tpu_custom_call.1} parent=1 // pred_check
      _
    $region27: #{tpu_custom_call.1} parent=1 // pred_check_branch
      %69 = sbr.rel (0) target = $region29
    $region28: #{tpu_custom_call.1} parent=1 // pred_region
      _
    $region29: #{tpu_custom_call.1} parent=1 // pred_fallthru
      _
    // Predicated region
    $region30: #{tpu_custom_call.1} parent=1 // pred_check
      _
    $region31: #{tpu_custom_call.1} parent=1 // pred_check_branch
      %71 = sbr.rel (0) target = $region33
    $region32: #{tpu_custom_call.1} parent=1 // pred_region
      %72 = dma.done [#allocation3], 256
    $region33: #{tpu_custom_call.1} parent=1 // pred_fallthru
      _
    // Predicated region
    $region34: #{tpu_custom_call.1} parent=1 // pred_check
      _
    $region35: #{tpu_custom_call.1} parent=1 // pred_check_branch
      %74 = sbr.rel (0) target = $region37
    $region36: #{tpu_custom_call.1} parent=1 // pred_region
      %75 = dma.done [#allocation6], 4096
    $region37: #{tpu_custom_call.1} parent=1 // pred_fallthru
      _
    // Predicated region
    $region38: #{tpu_custom_call.1} parent=1 // pred_check
      _
    $region39: #{tpu_custom_call.1} parent=1 // pred_check_branch
      %77 = sbr.rel (0) target = $region41
    $region40: #{tpu_custom_call.1} parent=1 // pred_region
      %78 = dma.done [#allocation6], 4096
    $region41: #{tpu_custom_call.1} parent=1 // pred_fallthru
      _
    // Predicated region
    $region42: #{tpu_custom_call.1} parent=1 // pred_check
      _
    $region43: #{tpu_custom_call.1} parent=1 // pred_check_branch
      %80 = sbr.rel (0) target = $region45
    $region44: #{tpu_custom_call.1} parent=1 // pred_region
      %81 = dma.done [#allocation9], 2048
    $region45: #{tpu_custom_call.1} parent=1 // pred_fallthru
      _
    %v83 = vld [vmem:[#allocation2] sm:$0xff]
    %v84 = vld [vmem:[#allocation2 + $0x8] sm:$0xff]
    %v85 = vld [vmem:[#allocation5] sm:$0xff]
    %v86 = vld [vmem:[#allocation5 + $0x8] sm:$0xff]
    %v87 = vld [vmem:[#allocation5 + $0x10] sm:$0xff]
    %v88 = vld [vmem:[#allocation5 + $0x18] sm:$0xff]
    %v89 = vld [vmem:[#allocation5 + $0x20] sm:$0xff]
    %v90 = vld [vmem:[#allocation5 + $0x28] sm:$0xff]
    %v91 = vld [vmem:[#allocation5 + $0x30] sm:$0xff]
    %v92 = vld [vmem:[#allocation5 + $0x38] sm:$0xff]
    %v93 = vld [vmem:[#allocation5 + $0x40] sm:$0xff]
    %v94 = vld [vmem:[#allocation5 + $0x48] sm:$0xff]
    %v95 = vld [vmem:[#allocation5 + $0x50] sm:$0xff]
    %v96 = vld [vmem:[#allocation5 + $0x58] sm:$0xff]
    %v97 = vld [vmem:[#allocation5 + $0x60] sm:$0xff]
    %v98 = vld [vmem:[#allocation5 + $0x68] sm:$0xff]
    %v99 = vld [vmem:[#allocation5 + $0x70] sm:$0xff]
    %v100 = vld [vmem:[#allocation5 + $0x78] sm:$0xff]
    %v101 = vld [vmem:[#allocation5 + $0x80] sm:$0xff]
    %v102 = vld [vmem:[#allocation5 + $0x88] sm:$0xff]
    %v103 = vld [vmem:[#allocation5 + $0x90] sm:$0xff]
    %v104 = vld [vmem:[#allocation5 + $0x98] sm:$0xff]
    %v105 = vld [vmem:[#allocation5 + $0xa0] sm:$0xff]
    %v106 = vld [vmem:[#allocation5 + $0xa8] sm:$0xff]
    %v107 = vld [vmem:[#allocation5 + $0xb0] sm:$0xff]
    %v108 = vld [vmem:[#allocation5 + $0xb8] sm:$0xff]
    %v109 = vld [vmem:[#allocation5 + $0xc0] sm:$0xff]
    %v110 = vld [vmem:[#allocation5 + $0xc8] sm:$0xff]
    %v111 = vld [vmem:[#allocation5 + $0xd0] sm:$0xff]
    %v112 = vld [vmem:[#allocation5 + $0xd8] sm:$0xff]
    %v113 = vld [vmem:[#allocation5 + $0xe0] sm:$0xff]
    %v114 = vld [vmem:[#allocation5 + $0xe8] sm:$0xff]
    %v115 = vld [vmem:[#allocation5 + $0xf0] sm:$0xff]
    %v116 = vld [vmem:[#allocation5 + $0xf8] sm:$0xff]
    %v119 = vunpack.c.l.b16 %v83
    %v120 = vunpack.c.h.b16 %v83
    %v121 = vunpack.c.l.b16 %v84
    %v122 = vunpack.c.h.b16 %v84
    %v123 = vpack.c.b16 %v121, %v119
    %v124 = vpack.c.b16 %v122, %v120
    %v159 = vunpack.c.l.b16 %v85
    %v160 = vunpack.c.h.b16 %v85
    %v161 = vunpack.c.l.b16 %v86
    %v162 = vunpack.c.h.b16 %v86
    %v163 = vunpack.c.l.b16 %v87
    %v164 = vunpack.c.h.b16 %v87
    %v165 = vunpack.c.l.b16 %v88
    %v166 = vunpack.c.h.b16 %v88
    %v167 = vunpack.c.l.b16 %v89
    %v168 = vunpack.c.h.b16 %v89
    %v169 = vunpack.c.l.b16 %v90
    %v170 = vunpack.c.h.b16 %v90
    %v171 = vunpack.c.l.b16 %v91
    %v172 = vunpack.c.h.b16 %v91
    %v173 = vunpack.c.l.b16 %v92
    %v174 = vunpack.c.h.b16 %v92
    %v175 = vunpack.c.l.b16 %v93
    %v176 = vunpack.c.h.b16 %v93
    %v177 = vunpack.c.l.b16 %v94
    %v178 = vunpack.c.h.b16 %v94
    %v179 = vunpack.c.l.b16 %v95
    %v180 = vunpack.c.h.b16 %v95
    %v181 = vunpack.c.l.b16 %v96
    %v182 = vunpack.c.h.b16 %v96
    %v183 = vunpack.c.l.b16 %v97
    %v184 = vunpack.c.h.b16 %v97
    %v185 = vunpack.c.l.b16 %v98
    %v186 = vunpack.c.h.b16 %v98
    %v187 = vunpack.c.l.b16 %v99
    %v188 = vunpack.c.h.b16 %v99
    %v189 = vunpack.c.l.b16 %v100
    %v190 = vunpack.c.h.b16 %v100
    %v191 = vunpack.c.l.b16 %v101
    %v192 = vunpack.c.h.b16 %v101
    %v193 = vunpack.c.l.b16 %v102
    %v194 = vunpack.c.h.b16 %v102
    %v195 = vunpack.c.l.b16 %v103
    %v196 = vunpack.c.h.b16 %v103
    %v197 = vunpack.c.l.b16 %v104
    %v198 = vunpack.c.h.b16 %v104
    %v199 = vunpack.c.l.b16 %v105
    %v200 = vunpack.c.h.b16 %v105
    %v201 = vunpack.c.l.b16 %v106
    %v202 = vunpack.c.h.b16 %v106
    %v203 = vunpack.c.l.b16 %v107
    %v204 = vunpack.c.h.b16 %v107
    %v205 = vunpack.c.l.b16 %v108
    %v206 = vunpack.c.h.b16 %v108
    %v207 = vunpack.c.l.b16 %v109
    %v208 = vunpack.c.h.b16 %v109
    %v209 = vunpack.c.l.b16 %v110
    %v210 = vunpack.c.h.b16 %v110
    %v211 = vunpack.c.l.b16 %v111
    %v212 = vunpack.c.h.b16 %v111
    %v213 = vunpack.c.l.b16 %v112
    %v214 = vunpack.c.h.b16 %v112
    %v215 = vunpack.c.l.b16 %v113
    %v216 = vunpack.c.h.b16 %v113
    %v217 = vunpack.c.l.b16 %v114
    %v218 = vunpack.c.h.b16 %v114
    %v219 = vunpack.c.l.b16 %v115
    %v220 = vunpack.c.h.b16 %v115
    %v221 = vunpack.c.l.b16 %v116
    %v222 = vunpack.c.h.b16 %v116
    %v223 = vpack.c.b16 %v161, %v159
    %v224 = vpack.c.b16 %v162, %v160
    %v225 = vpack.c.b16 %v165, %v163
    %v226 = vpack.c.b16 %v166, %v164
    %v227 = vpack.c.b16 %v169, %v167
    %v228 = vpack.c.b16 %v170, %v168
    %v229 = vpack.c.b16 %v173, %v171
    %v230 = vpack.c.b16 %v174, %v172
    %v231 = vpack.c.b16 %v177, %v175
    %v232 = vpack.c.b16 %v178, %v176
    %v233 = vpack.c.b16 %v181, %v179
    %v234 = vpack.c.b16 %v182, %v180
    %v235 = vpack.c.b16 %v185, %v183
    %v236 = vpack.c.b16 %v186, %v184
    %v237 = vpack.c.b16 %v189, %v187
    %v238 = vpack.c.b16 %v190, %v188
    %v239 = vpack.c.b16 %v193, %v191
    %v240 = vpack.c.b16 %v194, %v192
    %v241 = vpack.c.b16 %v197, %v195
    %v242 = vpack.c.b16 %v198, %v196
    %v243 = vpack.c.b16 %v201, %v199
    %v244 = vpack.c.b16 %v202, %v200
    %v245 = vpack.c.b16 %v205, %v203
    %v246 = vpack.c.b16 %v206, %v204
    %v247 = vpack.c.b16 %v209, %v207
    %v248 = vpack.c.b16 %v210, %v208
    %v249 = vpack.c.b16 %v213, %v211
    %v250 = vpack.c.b16 %v214, %v212
    %v251 = vpack.c.b16 %v217, %v215
    %v252 = vpack.c.b16 %v218, %v216
    %v253 = vpack.c.b16 %v221, %v219
    %v254 = vpack.c.b16 %v222, %v220
    %287 = vmatprep.subr.bf16.mxu0 %v224
    %288 = vmatpush1.bf16.msra.mxu0 %v223
    %289 = vmatprep.subr.bf16.mxu0 %v226
    %290 = vmatpush1.bf16.msra.mxu0 %v225
    %291 = vmatprep.subr.bf16.mxu0 %v228
    %292 = vmatpush1.bf16.msra.mxu0 %v227
    %293 = vmatprep.subr.bf16.mxu0 %v230
    %294 = vmatpush1.bf16.msra.mxu0 %v229
    %295 = vmatprep.subr.bf16.mxu0 %v232
    %296 = vmatpush1.bf16.msra.mxu0 %v231
    %297 = vmatprep.subr.bf16.mxu0 %v234
    %298 = vmatpush1.bf16.msra.mxu0 %v233
    %299 = vmatprep.subr.bf16.mxu0 %v236
    %300 = vmatpush1.bf16.msra.mxu0 %v235
    %301 = vmatprep.subr.bf16.mxu0 %v238
    %302 = vmatpush1.bf16.msra.mxu0 %v237
    %303 = vmatprep.subr.bf16.mxu0 %v240
    %304 = vmatpush1.bf16.msra.mxu0 %v239
    %305 = vmatprep.subr.bf16.mxu0 %v242
    %306 = vmatpush1.bf16.msra.mxu0 %v241
    %307 = vmatprep.subr.bf16.mxu0 %v244
    %308 = vmatpush1.bf16.msra.mxu0 %v243
    %309 = vmatprep.subr.bf16.mxu0 %v246
    %310 = vmatpush1.bf16.msra.mxu0 %v245
    %311 = vmatprep.subr.bf16.mxu0 %v248
    %312 = vmatpush1.bf16.msra.mxu0 %v247
    %313 = vmatprep.subr.bf16.mxu0 %v250
    %314 = vmatpush1.bf16.msra.mxu0 %v249
    %315 = vmatprep.subr.bf16.mxu0 %v252
    %316 = vmatpush1.bf16.msra.mxu0 %v251
    %317 = vmatprep.subr.bf16.mxu0 %v254
    %318 = vmatpush1.bf16.msra.mxu0 %v253
    %319 = vmatprep.mubr.bf16.mxu0 %v124
    %320 = vmatmul.mubr.bf16.gmra.mrb[0].mxu0 %v123
    %v321 = vpop.f32.mrb[0].mxu0
    %v322 = vadd.f32 0.0, %v321
    %v323 = vpop.f32.mrb[0].mxu0
    %v324 = vadd.f32 0.0, %v323
    %v325 = vpop.f32.mrb[0].mxu0
    %v326 = vadd.f32 0.0, %v325
    %v327 = vpop.f32.mrb[0].mxu0
    %v328 = vadd.f32 0.0, %v327
    %329 = vdwg.mxu0
    %v330 = vpack.c.bf16 %v326, %v322
    %v331 = vpack.c.bf16 %v328, %v324
    %v332 = vld [vmem:[%s2] sm:$0x3]
    %v335 = vunpack.c.l.s4 1966171168
    %v336 = vunpack.c.0.s8 %v335
    %v337 = vlaneseq
    %v338 = vshrl.u32 %v337, 7
    %v339 = vsub.s32 %v336, %v338
    %v340 = vrot.slane %v332, %v339
    %v341 = vcombine.high %v340, %v340
    %v343 = vunpack.c.l.s4 1966171168
    %v344 = vunpack.c.0.s8 %v343
    %v345 = vlaneseq
    %v346 = vshrl.u32 %v345, 7
    %v347 = vsub.s32 %v344, %v346
    %v348 = vrot.slane %v340, %v347
    %v350 = vunpack.c.l.s4 1966171168
    %v351 = vunpack.c.0.s8 %v350
    %v352 = vlaneseq
    %v353 = vshrl.u32 %v352, 7
    %v354 = vsub.s32 %v351, %v353
    %v355 = vrot.slane %v341, %v354
    %v357 = vpack.i.b16 %v348, %v348
    %v359 = vlaneseq
    %v360 = vshrl.u32 %v359, 7
    %v361 = vsub.s32 0, %v360
    %v362 = vrot.slane %v357, %v361
    %v364 = vpack.i.b16 %v355, %v355
    %v366 = vlaneseq
    %v367 = vshrl.u32 %v366, 7
    %v368 = vsub.s32 0, %v367
    %v369 = vrot.slane %v364, %v368
    %v370 = vadd.bf16 %v330, %v362
    %v371 = vadd.bf16 %v331, %v369
    %v372 = vmax.bf16 %v370, 0
    %v373 = vmax.bf16 %v371, 0
    %v374 = vld [vmem:[#allocation7] sm:$0xff]
    %v375 = vld [vmem:[#allocation7 + $0x8] sm:$0xff]
    %v376 = vld [vmem:[#allocation7 + $0x10] sm:$0xff]
    %v377 = vld [vmem:[#allocation7 + $0x18] sm:$0xff]
    %v378 = vld [vmem:[#allocation7 + $0x20] sm:$0xff]
    %v379 = vld [vmem:[#allocation7 + $0x28] sm:$0xff]
    %v380 = vld [vmem:[#allocation7 + $0x30] sm:$0xff]
    %v381 = vld [vmem:[#allocation7 + $0x38] sm:$0xff]
    %v382 = vld [vmem:[#allocation7 + $0x40] sm:$0xff]
    %v383 = vld [vmem:[#allocation7 + $0x48] sm:$0xff]
    %v384 = vld [vmem:[#allocation7 + $0x50] sm:$0xff]
    %v385 = vld [vmem:[#allocation7 + $0x58] sm:$0xff]
    %v386 = vld [vmem:[#allocation7 + $0x60] sm:$0xff]
    %v387 = vld [vmem:[#allocation7 + $0x68] sm:$0xff]
    %v388 = vld [vmem:[#allocation7 + $0x70] sm:$0xff]
    %v389 = vld [vmem:[#allocation7 + $0x78] sm:$0xff]
    %v390 = vld [vmem:[#allocation7 + $0x80] sm:$0xff]
    %v391 = vld [vmem:[#allocation7 + $0x88] sm:$0xff]
    %v392 = vld [vmem:[#allocation7 + $0x90] sm:$0xff]
    %v393 = vld [vmem:[#allocation7 + $0x98] sm:$0xff]
    %v394 = vld [vmem:[#allocation7 + $0xa0] sm:$0xff]
    %v395 = vld [vmem:[#allocation7 + $0xa8] sm:$0xff]
    %v396 = vld [vmem:[#allocation7 + $0xb0] sm:$0xff]
    %v397 = vld [vmem:[#allocation7 + $0xb8] sm:$0xff]
    %v398 = vld [vmem:[#allocation7 + $0xc0] sm:$0xff]
    %v399 = vld [vmem:[#allocation7 + $0xc8] sm:$0xff]
    %v400 = vld [vmem:[#allocation7 + $0xd0] sm:$0xff]
    %v401 = vld [vmem:[#allocation7 + $0xd8] sm:$0xff]
    %v402 = vld [vmem:[#allocation7 + $0xe0] sm:$0xff]
    %v403 = vld [vmem:[#allocation7 + $0xe8] sm:$0xff]
    %v404 = vld [vmem:[#allocation7 + $0xf0] sm:$0xff]
    %v405 = vld [vmem:[#allocation7 + $0xf8] sm:$0xff]
    %v438 = vunpack.c.l.b16 %v374
    %v439 = vunpack.c.h.b16 %v374
    %v440 = vunpack.c.l.b16 %v375
    %v441 = vunpack.c.h.b16 %v375
    %v442 = vunpack.c.l.b16 %v376
    %v443 = vunpack.c.h.b16 %v376
    %v444 = vunpack.c.l.b16 %v377
    %v445 = vunpack.c.h.b16 %v377
    %v446 = vunpack.c.l.b16 %v378
    %v447 = vunpack.c.h.b16 %v378
    %v448 = vunpack.c.l.b16 %v379
    %v449 = vunpack.c.h.b16 %v379
    %v450 = vunpack.c.l.b16 %v380
    %v451 = vunpack.c.h.b16 %v380
    %v452 = vunpack.c.l.b16 %v381
    %v453 = vunpack.c.h.b16 %v381
    %v454 = vunpack.c.l.b16 %v382
    %v455 = vunpack.c.h.b16 %v382
    %v456 = vunpack.c.l.b16 %v383
    %v457 = vunpack.c.h.b16 %v383
    %v458 = vunpack.c.l.b16 %v384
    %v459 = vunpack.c.h.b16 %v384
    %v460 = vunpack.c.l.b16 %v385
    %v461 = vunpack.c.h.b16 %v385
    %v462 = vunpack.c.l.b16 %v386
    %v463 = vunpack.c.h.b16 %v386
    %v464 = vunpack.c.l.b16 %v387
    %v465 = vunpack.c.h.b16 %v387
    %v466 = vunpack.c.l.b16 %v388
    %v467 = vunpack.c.h.b16 %v388
    %v468 = vunpack.c.l.b16 %v389
    %v469 = vunpack.c.h.b16 %v389
    %v470 = vunpack.c.l.b16 %v390
    %v471 = vunpack.c.h.b16 %v390
    %v472 = vunpack.c.l.b16 %v391
    %v473 = vunpack.c.h.b16 %v391
    %v474 = vunpack.c.l.b16 %v392
    %v475 = vunpack.c.h.b16 %v392
    %v476 = vunpack.c.l.b16 %v393
    %v477 = vunpack.c.h.b16 %v393
    %v478 = vunpack.c.l.b16 %v394
    %v479 = vunpack.c.h.b16 %v394
    %v480 = vunpack.c.l.b16 %v395
    %v481 = vunpack.c.h.b16 %v395
    %v482 = vunpack.c.l.b16 %v396
    %v483 = vunpack.c.h.b16 %v396
    %v484 = vunpack.c.l.b16 %v397
    %v485 = vunpack.c.h.b16 %v397
    %v486 = vunpack.c.l.b16 %v398
    %v487 = vunpack.c.h.b16 %v398
    %v488 = vunpack.c.l.b16 %v399
    %v489 = vunpack.c.h.b16 %v399
    %v490 = vunpack.c.l.b16 %v400
    %v491 = vunpack.c.h.b16 %v400
    %v492 = vunpack.c.l.b16 %v401
    %v493 = vunpack.c.h.b16 %v401
    %v494 = vunpack.c.l.b16 %v402
    %v495 = vunpack.c.h.b16 %v402
    %v496 = vunpack.c.l.b16 %v403
    %v497 = vunpack.c.h.b16 %v403
    %v498 = vunpack.c.l.b16 %v404
    %v499 = vunpack.c.h.b16 %v404
    %v500 = vunpack.c.l.b16 %v405
    %v501 = vunpack.c.h.b16 %v405
    %v502 = vpack.c.b16 %v440, %v438
    %v503 = vpack.c.b16 %v441, %v439
    %v504 = vpack.c.b16 %v444, %v442
    %v505 = vpack.c.b16 %v445, %v443
    %v506 = vpack.c.b16 %v448, %v446
    %v507 = vpack.c.b16 %v449, %v447
    %v508 = vpack.c.b16 %v452, %v450
    %v509 = vpack.c.b16 %v453, %v451
    %v510 = vpack.c.b16 %v456, %v454
    %v511 = vpack.c.b16 %v457, %v455
    %v512 = vpack.c.b16 %v460, %v458
    %v513 = vpack.c.b16 %v461, %v459
    %v514 = vpack.c.b16 %v464, %v462
    %v515 = vpack.c.b16 %v465, %v463
    %v516 = vpack.c.b16 %v468, %v466
    %v517 = vpack.c.b16 %v469, %v467
    %v518 = vpack.c.b16 %v472, %v470
    %v519 = vpack.c.b16 %v473, %v471
    %v520 = vpack.c.b16 %v476, %v474
    %v521 = vpack.c.b16 %v477, %v475
    %v522 = vpack.c.b16 %v480, %v478
    %v523 = vpack.c.b16 %v481, %v479
    %v524 = vpack.c.b16 %v484, %v482
    %v525 = vpack.c.b16 %v485, %v483
    %v526 = vpack.c.b16 %v488, %v486
    %v527 = vpack.c.b16 %v489, %v487
    %v528 = vpack.c.b16 %v492, %v490
    %v529 = vpack.c.b16 %v493, %v491
    %v530 = vpack.c.b16 %v496, %v494
    %v531 = vpack.c.b16 %v497, %v495
    %v532 = vpack.c.b16 %v500, %v498
    %v533 = vpack.c.b16 %v501, %v499
    %566 = vmatprep.subr.bf16.mxu0 %v503
    %567 = vmatpush1.bf16.msra.mxu0 %v502
    %568 = vmatprep.subr.bf16.mxu0 %v505
    %569 = vmatpush1.bf16.msra.mxu0 %v504
    %570 = vmatprep.subr.bf16.mxu0 %v507
    %571 = vmatpush1.bf16.msra.mxu0 %v506
    %572 = vmatprep.subr.bf16.mxu0 %v509
    %573 = vmatpush1.bf16.msra.mxu0 %v508
    %574 = vmatprep.subr.bf16.mxu0 %v511
    %575 = vmatpush1.bf16.msra.mxu0 %v510
    %576 = vmatprep.subr.bf16.mxu0 %v513
    %577 = vmatpush1.bf16.msra.mxu0 %v512
    %578 = vmatprep.subr.bf16.mxu0 %v515
    %579 = vmatpush1.bf16.msra.mxu0 %v514
    %580 = vmatprep.subr.bf16.mxu0 %v517
    %581 = vmatpush1.bf16.msra.mxu0 %v516
    %582 = vmatprep.subr.bf16.mxu0 %v519
    %583 = vmatpush1.bf16.msra.mxu0 %v518
    %584 = vmatprep.subr.bf16.mxu0 %v521
    %585 = vmatpush1.bf16.msra.mxu0 %v520
    %586 = vmatprep.subr.bf16.mxu0 %v523
    %587 = vmatpush1.bf16.msra.mxu0 %v522
    %588 = vmatprep.subr.bf16.mxu0 %v525
    %589 = vmatpush1.bf16.msra.mxu0 %v524
    %590 = vmatprep.subr.bf16.mxu0 %v527
    %591 = vmatpush1.bf16.msra.mxu0 %v526
    %592 = vmatprep.subr.bf16.mxu0 %v529
    %593 = vmatpush1.bf16.msra.mxu0 %v528
    %594 = vmatprep.subr.bf16.mxu0 %v531
    %595 = vmatpush1.bf16.msra.mxu0 %v530
    %596 = vmatprep.subr.bf16.mxu0 %v533
    %597 = vmatpush1.bf16.msra.mxu0 %v532
    %598 = vmatprep.mubr.bf16.mxu0 %v373
    %599 = vmatmul.mubr.bf16.gmra.mrb[0].mxu0 %v372
    %v600 = vpop.f32.mrb[0].mxu0
    %v601 = vadd.f32 0.0, %v600
    %v602 = vpop.f32.mrb[0].mxu0
    %v603 = vadd.f32 0.0, %v602
    %v604 = vpop.f32.mrb[0].mxu0
    %v605 = vadd.f32 0.0, %v604
    %v606 = vpop.f32.mrb[0].mxu0
    %v607 = vadd.f32 0.0, %v606
    %608 = vdwg.mxu0
    %v609 = vpack.c.bf16 %v605, %v601
    %v610 = vpack.c.bf16 %v607, %v603
    %v611 = vld [vmem:[%s4] sm:$0x3]
    %v614 = vunpack.c.l.s4 1966171168
    %v615 = vunpack.c.0.s8 %v614
    %v616 = vlaneseq
    %v617 = vshrl.u32 %v616, 7
    %v618 = vsub.s32 %v615, %v617
    %v619 = vrot.slane %v611, %v618
    %v620 = vcombine.high %v619, %v619
    %v622 = vunpack.c.l.s4 1966171168
    %v623 = vunpack.c.0.s8 %v622
    %v624 = vlaneseq
    %v625 = vshrl.u32 %v624, 7
    %v626 = vsub.s32 %v623, %v625
    %v627 = vrot.slane %v619, %v626
    %v629 = vunpack.c.l.s4 1966171168
    %v630 = vunpack.c.0.s8 %v629
    %v631 = vlaneseq
    %v632 = vshrl.u32 %v631, 7
    %v633 = vsub.s32 %v630, %v632
    %v634 = vrot.slane %v620, %v633
    %v636 = vpack.i.b16 %v627, %v627
    %v638 = vlaneseq
    %v639 = vshrl.u32 %v638, 7
    %v640 = vsub.s32 0, %v639
    %v641 = vrot.slane %v636, %v640
    %v643 = vpack.i.b16 %v634, %v634
    %v645 = vlaneseq
    %v646 = vshrl.u32 %v645, 7
    %v647 = vsub.s32 0, %v646
    %v648 = vrot.slane %v643, %v647
    %v649 = vadd.bf16 %v609, %v641
    %v650 = vadd.bf16 %v610, %v648
    %v651 = vmax.bf16 %v649, 0
    %v652 = vmax.bf16 %v650, 0
    %v653 = vld [vmem:[#allocation8] sm:$0xf]
    %v654 = vld [vmem:[#allocation8 + $0x4] sm:$0xf]
    %v655 = vld [vmem:[#allocation8 + $0x8] sm:$0xf]
    %v656 = vld [vmem:[#allocation8 + $0xc] sm:$0xf]
    %v657 = vld [vmem:[#allocation8 + $0x10] sm:$0xf]
    %v658 = vld [vmem:[#allocation8 + $0x14] sm:$0xf]
    %v659 = vld [vmem:[#allocation8 + $0x18] sm:$0xf]
    %v660 = vld [vmem:[#allocation8 + $0x1c] sm:$0xf]
    %v661 = vld [vmem:[#allocation8 + $0x20] sm:$0xf]
    %v662 = vld [vmem:[#allocation8 + $0x24] sm:$0xf]
    %v663 = vld [vmem:[#allocation8 + $0x28] sm:$0xf]
    %v664 = vld [vmem:[#allocation8 + $0x2c] sm:$0xf]
    %v665 = vld [vmem:[#allocation8 + $0x30] sm:$0xf]
    %v666 = vld [vmem:[#allocation8 + $0x34] sm:$0xf]
    %v667 = vld [vmem:[#allocation8 + $0x38] sm:$0xf]
    %v668 = vld [vmem:[#allocation8 + $0x3c] sm:$0xf]
    %v669 = vld [vmem:[#allocation8 + $0x40] sm:$0xf]
    %v670 = vld [vmem:[#allocation8 + $0x44] sm:$0xf]
    %v671 = vld [vmem:[#allocation8 + $0x48] sm:$0xf]
    %v672 = vld [vmem:[#allocation8 + $0x4c] sm:$0xf]
    %v673 = vld [vmem:[#allocation8 + $0x50] sm:$0xf]
    %v674 = vld [vmem:[#allocation8 + $0x54] sm:$0xf]
    %v675 = vld [vmem:[#allocation8 + $0x58] sm:$0xf]
    %v676 = vld [vmem:[#allocation8 + $0x5c] sm:$0xf]
    %v677 = vld [vmem:[#allocation8 + $0x60] sm:$0xf]
    %v678 = vld [vmem:[#allocation8 + $0x64] sm:$0xf]
    %v679 = vld [vmem:[#allocation8 + $0x68] sm:$0xf]
    %v680 = vld [vmem:[#allocation8 + $0x6c] sm:$0xf]
    %v681 = vld [vmem:[#allocation8 + $0x70] sm:$0xf]
    %v682 = vld [vmem:[#allocation8 + $0x74] sm:$0xf]
    %v683 = vld [vmem:[#allocation8 + $0x78] sm:$0xf]
    %v684 = vld [vmem:[#allocation8 + $0x7c] sm:$0xf]
    %v685 = vld [vmem:[%s6] sm:$0x1]
    %v687 = vlaneseq
    %v688 = vshrl.u32 %v687, 7
    %v689 = vsub.s32 0, %v688
    %v690 = vrot.slane %v685, %v689
    %v724 = vunpack.c.l.b16 %v653
    %v725 = vunpack.c.l.b16 %v654
    %v726 = vunpack.c.l.b16 %v655
    %v727 = vunpack.c.l.b16 %v656
    %v728 = vunpack.c.l.b16 %v657
    %v729 = vunpack.c.l.b16 %v658
    %v730 = vunpack.c.l.b16 %v659
    %v731 = vunpack.c.l.b16 %v660
    %v732 = vunpack.c.l.b16 %v661
    %v733 = vunpack.c.l.b16 %v662
    %v734 = vunpack.c.l.b16 %v663
    %v735 = vunpack.c.l.b16 %v664
    %v736 = vunpack.c.l.b16 %v665
    %v737 = vunpack.c.l.b16 %v666
    %v738 = vunpack.c.l.b16 %v667
    %v739 = vunpack.c.l.b16 %v668
    %v740 = vunpack.c.l.b16 %v669
    %v741 = vunpack.c.l.b16 %v670
    %v742 = vunpack.c.l.b16 %v671
    %v743 = vunpack.c.l.b16 %v672
    %v744 = vunpack.c.l.b16 %v673
    %v745 = vunpack.c.l.b16 %v674
    %v746 = vunpack.c.l.b16 %v675
    %v747 = vunpack.c.l.b16 %v676
    %v748 = vunpack.c.l.b16 %v677
    %v749 = vunpack.c.l.b16 %v678
    %v750 = vunpack.c.l.b16 %v679
    %v751 = vunpack.c.l.b16 %v680
    %v752 = vunpack.c.l.b16 %v681
    %v753 = vunpack.c.l.b16 %v682
    %v754 = vunpack.c.l.b16 %v683
    %v755 = vunpack.c.l.b16 %v684
    %v756 = vpack.c.b16 %v725, %v724
    %v757 = vpack.c.b16 %v727, %v726
    %v758 = vpack.c.b16 %v729, %v728
    %v759 = vpack.c.b16 %v731, %v730
    %v760 = vpack.c.b16 %v733, %v732
    %v761 = vpack.c.b16 %v735, %v734
    %v762 = vpack.c.b16 %v737, %v736
    %v763 = vpack.c.b16 %v739, %v738
    %v764 = vpack.c.b16 %v741, %v740
    %v765 = vpack.c.b16 %v743, %v742
    %v766 = vpack.c.b16 %v745, %v744
    %v767 = vpack.c.b16 %v747, %v746
    %v768 = vpack.c.b16 %v749, %v748
    %v769 = vpack.c.b16 %v751, %v750
    %v770 = vpack.c.b16 %v753, %v752
    %v771 = vpack.c.b16 %v755, %v754
    %788 = vmatprep.subr.bf16.mxu0 0
    %789 = vmatpush1.bf16.msra.mxu0 %v756
    %790 = vmatprep.subr.bf16.mxu0 0
    %791 = vmatpush1.bf16.msra.mxu0 %v757
    %792 = vmatprep.subr.bf16.mxu0 0
    %793 = vmatpush1.bf16.msra.mxu0 %v758
    %794 = vmatprep.subr.bf16.mxu0 0
    %795 = vmatpush1.bf16.msra.mxu0 %v759
    %796 = vmatprep.subr.bf16.mxu0 0
    %797 = vmatpush1.bf16.msra.mxu0 %v760
    %798 = vmatprep.subr.bf16.mxu0 0
    %799 = vmatpush1.bf16.msra.mxu0 %v761
    %800 = vmatprep.subr.bf16.mxu0 0
    %801 = vmatpush1.bf16.msra.mxu0 %v762
    %802 = vmatprep.subr.bf16.mxu0 0
    %803 = vmatpush1.bf16.msra.mxu0 %v763
    %804 = vmatprep.subr.bf16.mxu0 0
    %805 = vmatpush1.bf16.msra.mxu0 %v764
    %806 = vmatprep.subr.bf16.mxu0 0
    %807 = vmatpush1.bf16.msra.mxu0 %v765
    %808 = vmatprep.subr.bf16.mxu0 0
    %809 = vmatpush1.bf16.msra.mxu0 %v766
    %810 = vmatprep.subr.bf16.mxu0 0
    %811 = vmatpush1.bf16.msra.mxu0 %v767
    %812 = vmatprep.subr.bf16.mxu0 0
    %813 = vmatpush1.bf16.msra.mxu0 %v768
    %814 = vmatprep.subr.bf16.mxu0 0
    %815 = vmatpush1.bf16.msra.mxu0 %v769
    %816 = vmatprep.subr.bf16.mxu0 0
    %817 = vmatpush1.bf16.msra.mxu0 %v770
    %818 = vmatprep.subr.bf16.mxu0 0
    %819 = vmatpush1.bf16.msra.mxu0 %v771
    %820 = vmatprep.mubr.bf16.mxu0 %v652
    %821 = vmatmul.mubr.bf16.gmra.mrb[0].mxu0 %v651
    %v822 = vpop.f32.mrb[0].mxu0
    %v823 = vadd.f32 %v690, %v822
    %v824 = vpop.f32.mrb[0].mxu0
    %v825 = vpop.f32.mrb[0].mxu0
    %v826 = vadd.f32 %v690, %v825
    %v827 = vpop.f32.mrb[0].mxu0
    %828 = vdwg.mxu0
    %v829 = vpack.c.bf16 %v826, %v823
    %v831 = vunpack.c.l.b16 %v829
    %v832 = vunpack.c.h.b16 %v829
    %v833 = vpack.c.b16 %v831, %v831
    %v834 = vpack.c.b16 %v832, %v832
    %837 = vst [vmem:[#allocation10] sm:$0xf] %v833
    %838 = vst [vmem:[#allocation10 + $0x4] sm:$0xf] %v834
    // Predicated region
    $region46: #{tpu_custom_call.1} parent=1 // pred_check
      _
    $region47: #{tpu_custom_call.1} parent=1 // pred_check_branch
      %840 = sbr.rel (0) target = $region49
    $region48: #{tpu_custom_call.1} parent=1 // pred_region
      %s842 = ssub.s32 128, 128
      %843 = vsyncadd [#allocation4], %s842
      %s844 = sshll.u32 [#allocation10], 4
      %s845 = int_to_ptr.vmem [resolvable:$true] %s844
      %850 = dma.vmem_to_hbm [thread:$0]  %s845, 128, %s7, [#allocation4], 64, 64, 4
    $region49: #{tpu_custom_call.1} parent=1 // pred_fallthru
      _
    // Predicated region
    $region50: #{tpu_custom_call.1} parent=1 // pred_check
      _
    $region51: #{tpu_custom_call.1} parent=1 // pred_check_branch
      %852 = sbr.rel (0) target = $region53
    $region52: #{tpu_custom_call.1} parent=1 // pred_region
      %853 = dma.done [#allocation4], 128
    $region53: #{tpu_custom_call.1} parent=1 // pred_fallthru
      _
    %854 = vsyncpa [#allocation3], 1
    %855 = vsyncpa [#allocation6], 1
    %856 = vsyncpa [#allocation9], 1
    %857 = vsyncpa [#allocation4], 1

// kernel: tpu_custom_call.1
$region0: #{tpu_custom_call.1}
  #allocation0 [shape = 'u32[]', space=smem, size = 0x4, offset = 0x4, fixed_abs, tag = 'smem constant byte address 0x4 - core index']
  #allocation1 [shape = 'u32[144,128]{1,0:T(1,128)}', space=vmem, size = 0x12000, scoped, tag = 'internal scratch']
  %s0 = inlined_call_operand.hbm [shape: bf16[16,256], index: 0, kind: input, shape index: {}]
  %s1 = inlined_call_operand.hbm [shape: bf16[256,256], index: 1, kind: input, shape index: {}]
  %s2 = inlined_call_operand.vmem [shape: bf16[1,256], index: 2, kind: input, shape index: {}]
  %s3 = inlined_call_operand.hbm [shape: bf16[256,256], index: 3, kind: input, shape index: {}]
  %s4 = inlined_call_operand.vmem [shape: bf16[1,256], index: 4, kind: input, shape index: {}]
  %s5 = inlined_call_operand.hbm [shape: bf16[256,128], index: 5, kind: input, shape index: {}]
  %s6 = inlined_call_operand.vmem [shape: f32[1,128], index: 6, kind: input, shape index: {}]
  %s7 = inlined_call_operand.hbm [shape: bf16[16,128], index: 7, kind: output, shape index: {}]
  %s8 = sld [smem:[#allocation0]]
  $region54: #{tpu_custom_call.1} parent=0
    _
  %s10 = ssub.s32 1, %s8
  %s11 = scalar_select 0, %s10, %s8
  $region1: #{tpu_custom_call.1} parent=0
    #allocation2 [shape = 'u8[8192]{0}', space=vmem, size = 0x2000, scoped, tag = 'input window, operand 0, single buffered']
    #allocation3 [shape = 's32[1]{0}', space=sflag, size = 0x4, scoped, tag = 'scoped memory for tpu_custom_call.1']
    #allocation4 [shape = 's32[1]{0}', space=sflag, size = 0x4, scoped, tag = 'scoped memory for tpu_custom_call.1']
    #allocation5 [shape = 'u8[131072]{0}', space=vmem, size = 0x20000, scoped, tag = 'input window, operand 1, single buffered']
    #allocation6 [shape = 's32[1]{0}', space=sflag, size = 0x4, scoped, tag = 'scoped memory for tpu_custom_call.1']
    #allocation7 [shape = 'u8[131072]{0}', space=vmem, size = 0x20000, scoped, tag = 'input window, operand 3, single buffered']
    #allocation8 [shape = 'u8[65536]{0}', space=vmem, size = 0x10000, scoped, tag = 'input window, operand 5, single buffered']
    #allocation9 [shape = 's32[1]{0}', space=sflag, size = 0x4, scoped, tag = 'scoped memory for tpu_custom_call.1']
    #allocation10 [shape = 'u8[4096]{0}', space=vmem, size = 0x1000, scoped, tag = 'output window, operand 0, single buffered']
    %12 = vsyncpa [#allocation3], 0
    %13 = vsyncpa [#allocation6], 0
    %14 = vsyncpa [#allocation9], 0
    %15 = vsyncpa [#allocation4], 0
    // Predicated region
    $region2: #{tpu_custom_call.1} parent=1 // pred_check
      _
    $region3: #{tpu_custom_call.1} parent=1 // pred_check_branch
      %17 = sbr.rel (0) target = $region5
    $region4: #{tpu_custom_call.1} parent=1 // pred_region
      %s19 = ssub.s32 256, 256
      %20 = vsyncadd [#allocation3], %s19
      %s21 = sshll.u32 [#allocation2], 4
      %s22 = int_to_ptr.vmem [resolvable:$true] %s21
      %27 = dma.hbm_to_vmem [thread:$0]  %s0, 256, %s22, [#allocation3], 128, 128, 8
    $region5: #{tpu_custom_call.1} parent=1 // pred_fallthru
      _
    // Predicated region
    $region6: #{tpu_custom_call.1} parent=1 // pred_check
      _
    $region7: #{tpu_custom_call.1} parent=1 // pred_check_branch
      %29 = sbr.rel (0) target = $region9
    $region8: #{tpu_custom_call.1} parent=1 // pred_region
      %s31 = ssub.s32 4096, 4096
      %32 = vsyncadd [#allocation6], %s31
      %s33 = sshll.u32 [#allocation5], 4
      %s34 = int_to_ptr.vmem [resolvable:$true] %s33
      %39 = dma.hbm_to_vmem [thread:$0]  %s1, 4096, %s34, [#allocation6], 128, 128, 8
    $region9: #{tpu_custom_call.1} parent=1 // pred_fallthru
      _
    // Predicated region
    $region10: #{tpu_custom_call.1} parent=1 // pred_check
      _
    $region11: #{tpu_custom_call.1} parent=1 // pred_check_branch
      %41 = sbr.rel (0) target = $region13
    $region12: #{tpu_custom_call.1} parent=1 // pred_region
      _
    $region13: #{tpu_custom_call.1} parent=1 // pred_fallthru
      _
    // Predicated region
    $region14: #{tpu_custom_call.1} parent=1 // pred_check
      _
    $region15: #{tpu_custom_call.1} parent=1 // pred_check_branch
      %43 = sbr.rel (0) target = $region17
    $region16: #{tpu_custom_call.1} parent=1 // pred_region
      %s45 = ssub.s32 4096, 4096
      %46 = vsyncadd [#allocation6], %s45
      %s47 = sshll.u32 [#allocation7], 4
      %s48 = int_to_ptr.vmem [resolvable:$true] %s47
      %53 = dma.hbm_to_vmem [thread:$0]  %s3, 4096, %s48, [#allocation6], 128, 128, 8
    $region17: #{tpu_custom_call.1} parent=1 // pred_fallthru
      _
    // Predicated region
    $region18: #{tpu_custom_call.1} parent=1 // pred_check
      _
    $region19: #{tpu_custom_call.1} parent=1 // pred_check_branch
      %55 = sbr.rel (0) target = $region21
    $region20: #{tpu_custom_call.1} parent=1 // pred_region
      _
    $region21: #{tpu_custom_call.1} parent=1 // pred_fallthru
      _
    // Predicated region
    $region22: #{tpu_custom_call.1} parent=1 // pred_check
      _
    $region23: #{tpu_custom_call.1} parent=1 // pred_check_branch
      %57 = sbr.rel (0) target = $region25
    $region24: #{tpu_custom_call.1} parent=1 // pred_region
      %s59 = ssub.s32 2048, 2048
      %60 = vsyncadd [#allocation9], %s59
      %s61 = sshll.u32 [#allocation8], 4
      %s62 = int_to_ptr.vmem [resolvable:$true] %s61
      %67 = dma.hbm_to_vmem [thread:$0]  %s5, 2048, %s62, [#allocation9], 64, 64, 4
    $region25: #{tpu_custom_call.1} parent=1 // pred_fallthru
      _
    // Predicated region
    $region26: #{tpu_custom_call.1} parent=1 // pred_check
      _
    $region27: #{tpu_custom_call.1} parent=1 // pred_check_branch
      %69 = sbr.rel (0) target = $region29
    $region28: #{tpu_custom_call.1} parent=1 // pred_region
      _
    $region29: #{tpu_custom_call.1} parent=1 // pred_fallthru
      _
    // Predicated region
    $region30: #{tpu_custom_call.1} parent=1 // pred_check
      _
    $region31: #{tpu_custom_call.1} parent=1 // pred_check_branch
      %71 = sbr.rel (0) target = $region33
    $region32: #{tpu_custom_call.1} parent=1 // pred_region
      %72 = dma.done [#allocation3], 256
    $region33: #{tpu_custom_call.1} parent=1 // pred_fallthru
      _
    // Predicated region
    $region34: #{tpu_custom_call.1} parent=1 // pred_check
      _
    $region35: #{tpu_custom_call.1} parent=1 // pred_check_branch
      %74 = sbr.rel (0) target = $region37
    $region36: #{tpu_custom_call.1} parent=1 // pred_region
      %75 = dma.done [#allocation6], 4096
    $region37: #{tpu_custom_call.1} parent=1 // pred_fallthru
      _
    // Predicated region
    $region38: #{tpu_custom_call.1} parent=1 // pred_check
      _
    $region39: #{tpu_custom_call.1} parent=1 // pred_check_branch
      %77 = sbr.rel (0) target = $region41
    $region40: #{tpu_custom_call.1} parent=1 // pred_region
      %78 = dma.done [#allocation6], 4096
    $region41: #{tpu_custom_call.1} parent=1 // pred_fallthru
      _
    // Predicated region
    $region42: #{tpu_custom_call.1} parent=1 // pred_check
      _
    $region43: #{tpu_custom_call.1} parent=1 // pred_check_branch
      %80 = sbr.rel (0) target = $region45
    $region44: #{tpu_custom_call.1} parent=1 // pred_region
      %81 = dma.done [#allocation9], 2048
    $region45: #{tpu_custom_call.1} parent=1 // pred_fallthru
      _
    %v83 = vld [vmem:[#allocation2] sm:$0xff]
    %v84 = vld [vmem:[#allocation2 + $0x8] sm:$0xff]
    %v85 = vld [vmem:[#allocation5] sm:$0xff]
    %v86 = vld [vmem:[#allocation5 + $0x8] sm:$0xff]
    %v87 = vld [vmem:[#allocation5 + $0x10] sm:$0xff]
    %v88 = vld [vmem:[#allocation5 + $0x18] sm:$0xff]
    %v89 = vld [vmem:[#allocation5 + $0x20] sm:$0xff]
    %v90 = vld [vmem:[#allocation5 + $0x28] sm:$0xff]
    %v91 = vld [vmem:[#allocation5 + $0x30] sm:$0xff]
    %v92 = vld [vmem:[#allocation5 + $0x38] sm:$0xff]
    %v93 = vld [vmem:[#allocation5 + $0x40] sm:$0xff]
    %v94 = vld [vmem:[#allocation5 + $0x48] sm:$0xff]
    %v95 = vld [vmem:[#allocation5 + $0x50] sm:$0xff]
    %v96 = vld [vmem:[#allocation5 + $0x58] sm:$0xff]
    %v97 = vld [vmem:[#allocation5 + $0x60] sm:$0xff]
    %v98 = vld [vmem:[#allocation5 + $0x68] sm:$0xff]
    %v99 = vld [vmem:[#allocation5 + $0x70] sm:$0xff]
    %v100 = vld [vmem:[#allocation5 + $0x78] sm:$0xff]
    %v101 = vld [vmem:[#allocation5 + $0x80] sm:$0xff]
    %v102 = vld [vmem:[#allocation5 + $0x88] sm:$0xff]
    %v103 = vld [vmem:[#allocation5 + $0x90] sm:$0xff]
    %v104 = vld [vmem:[#allocation5 + $0x98] sm:$0xff]
    %v105 = vld [vmem:[#allocation5 + $0xa0] sm:$0xff]
    %v106 = vld [vmem:[#allocation5 + $0xa8] sm:$0xff]
    %v107 = vld [vmem:[#allocation5 + $0xb0] sm:$0xff]
    %v108 = vld [vmem:[#allocation5 + $0xb8] sm:$0xff]
    %v109 = vld [vmem:[#allocation5 + $0xc0] sm:$0xff]
    %v110 = vld [vmem:[#allocation5 + $0xc8] sm:$0xff]
    %v111 = vld [vmem:[#allocation5 + $0xd0] sm:$0xff]
    %v112 = vld [vmem:[#allocation5 + $0xd8] sm:$0xff]
    %v113 = vld [vmem:[#allocation5 + $0xe0] sm:$0xff]
    %v114 = vld [vmem:[#allocation5 + $0xe8] sm:$0xff]
    %v115 = vld [vmem:[#allocation5 + $0xf0] sm:$0xff]
    %v116 = vld [vmem:[#allocation5 + $0xf8] sm:$0xff]
    %v119 = vunpack.c.l.b16 %v83
    %v120 = vunpack.c.h.b16 %v83
    %v121 = vunpack.c.l.b16 %v84
    %v122 = vunpack.c.h.b16 %v84
    %v123 = vpack.c.b16 %v121, %v119
    %v124 = vpack.c.b16 %v122, %v120
    %v159 = vunpack.c.l.b16 %v85
    %v160 = vunpack.c.h.b16 %v85
    %v161 = vunpack.c.l.b16 %v86
    %v162 = vunpack.c.h.b16 %v86
    %v163 = vunpack.c.l.b16 %v87
    %v164 = vunpack.c.h.b16 %v87
    %v165 = vunpack.c.l.b16 %v88
    %v166 = vunpack.c.h.b16 %v88
    %v167 = vunpack.c.l.b16 %v89
    %v168 = vunpack.c.h.b16 %v89
    %v169 = vunpack.c.l.b16 %v90
    %v170 = vunpack.c.h.b16 %v90
    %v171 = vunpack.c.l.b16 %v91
    %v172 = vunpack.c.h.b16 %v91
    %v173 = vunpack.c.l.b16 %v92
    %v174 = vunpack.c.h.b16 %v92
    %v175 = vunpack.c.l.b16 %v93
    %v176 = vunpack.c.h.b16 %v93
    %v177 = vunpack.c.l.b16 %v94
    %v178 = vunpack.c.h.b16 %v94
    %v179 = vunpack.c.l.b16 %v95
    %v180 = vunpack.c.h.b16 %v95
    %v181 = vunpack.c.l.b16 %v96
    %v182 = vunpack.c.h.b16 %v96
    %v183 = vunpack.c.l.b16 %v97
    %v184 = vunpack.c.h.b16 %v97
    %v185 = vunpack.c.l.b16 %v98
    %v186 = vunpack.c.h.b16 %v98
    %v187 = vunpack.c.l.b16 %v99
    %v188 = vunpack.c.h.b16 %v99
    %v189 = vunpack.c.l.b16 %v100
    %v190 = vunpack.c.h.b16 %v100
    %v191 = vunpack.c.l.b16 %v101
    %v192 = vunpack.c.h.b16 %v101
    %v193 = vunpack.c.l.b16 %v102
    %v194 = vunpack.c.h.b16 %v102
    %v195 = vunpack.c.l.b16 %v103
    %v196 = vunpack.c.h.b16 %v103
    %v197 = vunpack.c.l.b16 %v104
    %v198 = vunpack.c.h.b16 %v104
    %v199 = vunpack.c.l.b16 %v105
    %v200 = vunpack.c.h.b16 %v105
    %v201 = vunpack.c.l.b16 %v106
    %v202 = vunpack.c.h.b16 %v106
    %v203 = vunpack.c.l.b16 %v107
    %v204 = vunpack.c.h.b16 %v107
    %v205 = vunpack.c.l.b16 %v108
    %v206 = vunpack.c.h.b16 %v108
    %v207 = vunpack.c.l.b16 %v109
    %v208 = vunpack.c.h.b16 %v109
    %v209 = vunpack.c.l.b16 %v110
    %v210 = vunpack.c.h.b16 %v110
    %v211 = vunpack.c.l.b16 %v111
    %v212 = vunpack.c.h.b16 %v111
    %v213 = vunpack.c.l.b16 %v112
    %v214 = vunpack.c.h.b16 %v112
    %v215 = vunpack.c.l.b16 %v113
    %v216 = vunpack.c.h.b16 %v113
    %v217 = vunpack.c.l.b16 %v114
    %v218 = vunpack.c.h.b16 %v114
    %v219 = vunpack.c.l.b16 %v115
    %v220 = vunpack.c.h.b16 %v115
    %v221 = vunpack.c.l.b16 %v116
    %v222 = vunpack.c.h.b16 %v116
    %v223 = vpack.c.b16 %v161, %v159
    %v224 = vpack.c.b16 %v162, %v160
    %v225 = vpack.c.b16 %v165, %v163
    %v226 = vpack.c.b16 %v166, %v164
    %v227 = vpack.c.b16 %v169, %v167
    %v228 = vpack.c.b16 %v170, %v168
    %v229 = vpack.c.b16 %v173, %v171
    %v230 = vpack.c.b16 %v174, %v172
    %v231 = vpack.c.b16 %v177, %v175
    %v232 = vpack.c.b16 %v178, %v176
    %v233 = vpack.c.b16 %v181, %v179
    %v234 = vpack.c.b16 %v182, %v180
    %v235 = vpack.c.b16 %v185, %v183
    %v236 = vpack.c.b16 %v186, %v184
    %v237 = vpack.c.b16 %v189, %v187
    %v238 = vpack.c.b16 %v190, %v188
    %v239 = vpack.c.b16 %v193, %v191
    %v240 = vpack.c.b16 %v194, %v192
    %v241 = vpack.c.b16 %v197, %v195
    %v242 = vpack.c.b16 %v198, %v196
    %v243 = vpack.c.b16 %v201, %v199
    %v244 = vpack.c.b16 %v202, %v200
    %v245 = vpack.c.b16 %v205, %v203
    %v246 = vpack.c.b16 %v206, %v204
    %v247 = vpack.c.b16 %v209, %v207
    %v248 = vpack.c.b16 %v210, %v208
    %v249 = vpack.c.b16 %v213, %v211
    %v250 = vpack.c.b16 %v214, %v212
    %v251 = vpack.c.b16 %v217, %v215
    %v252 = vpack.c.b16 %v218, %v216
    %v253 = vpack.c.b16 %v221, %v219
    %v254 = vpack.c.b16 %v222, %v220
    %287 = vmatprep.subr.bf16.mxu0 %v224
    %288 = vmatpush1.bf16.msra.mxu0 %v223
    %289 = vmatprep.subr.bf16.mxu0 %v226
    %290 = vmatpush1.bf16.msra.mxu0 %v225
    %291 = vmatprep.subr.bf16.mxu0 %v228
    %292 = vmatpush1.bf16.msra.mxu0 %v227
    %293 = vmatprep.subr.bf16.mxu0 %v230
    %294 = vmatpush1.bf16.msra.mxu0 %v229
    %295 = vmatprep.subr.bf16.mxu0 %v232
    %296 = vmatpush1.bf16.msra.mxu0 %v231
    %297 = vmatprep.subr.bf16.mxu0 %v234
    %298 = vmatpush1.bf16.msra.mxu0 %v233
    %299 = vmatprep.subr.bf16.mxu0 %v236
    %300 = vmatpush1.bf16.msra.mxu0 %v235
    %301 = vmatprep.subr.bf16.mxu0 %v238
    %302 = vmatpush1.bf16.msra.mxu0 %v237
    %303 = vmatprep.subr.bf16.mxu0 %v240
    %304 = vmatpush1.bf16.msra.mxu0 %v239
    %305 = vmatprep.subr.bf16.mxu0 %v242
    %306 = vmatpush1.bf16.msra.mxu0 %v241
    %307 = vmatprep.subr.bf16.mxu0 %v244
    %308 = vmatpush1.bf16.msra.mxu0 %v243
    %309 = vmatprep.subr.bf16.mxu0 %v246
    %310 = vmatpush1.bf16.msra.mxu0 %v245
    %311 = vmatprep.subr.bf16.mxu0 %v248
    %312 = vmatpush1.bf16.msra.mxu0 %v247
    %313 = vmatprep.subr.bf16.mxu0 %v250
    %314 = vmatpush1.bf16.msra.mxu0 %v249
    %315 = vmatprep.subr.bf16.mxu0 %v252
    %316 = vmatpush1.bf16.msra.mxu0 %v251
    %317 = vmatprep.subr.bf16.mxu0 %v254
    %318 = vmatpush1.bf16.msra.mxu0 %v253
    %319 = vmatprep.mubr.bf16.mxu0 %v124
    %320 = vmatmul.mubr.bf16.gmra.mrb[0].mxu0 %v123
    %v321 = vpop.f32.mrb[0].mxu0
    %v322 = vadd.f32 0.0, %v321
    %v323 = vpop.f32.mrb[0].mxu0
    %v324 = vadd.f32 0.0, %v323
    %v325 = vpop.f32.mrb[0].mxu0
    %v326 = vadd.f32 0.0, %v325
    %v327 = vpop.f32.mrb[0].mxu0
    %v328 = vadd.f32 0.0, %v327
    %329 = vdwg.mxu0
    %v330 = vpack.c.bf16 %v326, %v322
    %v331 = vpack.c.bf16 %v328, %v324
    %v332 = vld [vmem:[%s2] sm:$0x3]
    %v335 = vunpack.c.l.s4 1966171168
    %v336 = vunpack.c.0.s8 %v335
    %v337 = vlaneseq
    %v338 = vshrl.u32 %v337, 7
    %v339 = vsub.s32 %v336, %v338
    %v340 = vrot.slane %v332, %v339
    %v341 = vcombine.high %v340, %v340
    %v343 = vunpack.c.l.s4 1966171168
    %v344 = vunpack.c.0.s8 %v343
    %v345 = vlaneseq
    %v346 = vshrl.u32 %v345, 7
    %v347 = vsub.s32 %v344, %v346
    %v348 = vrot.slane %v340, %v347
    %v350 = vunpack.c.l.s4 1966171168
    %v351 = vunpack.c.0.s8 %v350
    %v352 = vlaneseq
    %v353 = vshrl.u32 %v352, 7
    %v354 = vsub.s32 %v351, %v353
    %v355 = vrot.slane %v341, %v354
    %v357 = vpack.i.b16 %v348, %v348
    %v359 = vlaneseq
    %v360 = vshrl.u32 %v359, 7
    %v361 = vsub.s32 0, %v360
    %v362 = vrot.slane %v357, %v361
    %v364 = vpack.i.b16 %v355, %v355
    %v366 = vlaneseq
    %v367 = vshrl.u32 %v366, 7
    %v368 = vsub.s32 0, %v367
    %v369 = vrot.slane %v364, %v368
    %v370 = vadd.bf16 %v330, %v362
    %v371 = vadd.bf16 %v331, %v369
    %v372 = vmax.bf16 %v370, 0
    %v373 = vmax.bf16 %v371, 0
    %v374 = vld [vmem:[#allocation7] sm:$0xff]
    %v375 = vld [vmem:[#allocation7 + $0x8] sm:$0xff]
    %v376 = vld [vmem:[#allocation7 + $0x10] sm:$0xff]
    %v377 = vld [vmem:[#allocation7 + $0x18] sm:$0xff]
    %v378 = vld [vmem:[#allocation7 + $0x20] sm:$0xff]
    %v379 = vld [vmem:[#allocation7 + $0x28] sm:$0xff]
    %v380 = vld [vmem:[#allocation7 + $0x30] sm:$0xff]
    %v381 = vld [vmem:[#allocation7 + $0x38] sm:$0xff]
    %v382 = vld [vmem:[#allocation7 + $0x40] sm:$0xff]
    %v383 = vld [vmem:[#allocation7 + $0x48] sm:$0xff]
    %v384 = vld [vmem:[#allocation7 + $0x50] sm:$0xff]
    %v385 = vld [vmem:[#allocation7 + $0x58] sm:$0xff]
    %v386 = vld [vmem:[#allocation7 + $0x60] sm:$0xff]
    %v387 = vld [vmem:[#allocation7 + $0x68] sm:$0xff]
    %v388 = vld [vmem:[#allocation7 + $0x70] sm:$0xff]
    %v389 = vld [vmem:[#allocation7 + $0x78] sm:$0xff]
    %v390 = vld [vmem:[#allocation7 + $0x80] sm:$0xff]
    %v391 = vld [vmem:[#allocation7 + $0x88] sm:$0xff]
    %v392 = vld [vmem:[#allocation7 + $0x90] sm:$0xff]
    %v393 = vld [vmem:[#allocation7 + $0x98] sm:$0xff]
    %v394 = vld [vmem:[#allocation7 + $0xa0] sm:$0xff]
    %v395 = vld [vmem:[#allocation7 + $0xa8] sm:$0xff]
    %v396 = vld [vmem:[#allocation7 + $0xb0] sm:$0xff]
    %v397 = vld [vmem:[#allocation7 + $0xb8] sm:$0xff]
    %v398 = vld [vmem:[#allocation7 + $0xc0] sm:$0xff]
    %v399 = vld [vmem:[#allocation7 + $0xc8] sm:$0xff]
    %v400 = vld [vmem:[#allocation7 + $0xd0] sm:$0xff]
    %v401 = vld [vmem:[#allocation7 + $0xd8] sm:$0xff]
    %v402 = vld [vmem:[#allocation7 + $0xe0] sm:$0xff]
    %v403 = vld [vmem:[#allocation7 + $0xe8] sm:$0xff]
    %v404 = vld [vmem:[#allocation7 + $0xf0] sm:$0xff]
    %v405 = vld [vmem:[#allocation7 + $0xf8] sm:$0xff]
    %v438 = vunpack.c.l.b16 %v374
    %v439 = vunpack.c.h.b16 %v374
    %v440 = vunpack.c.l.b16 %v375
    %v441 = vunpack.c.h.b16 %v375
    %v442 = vunpack.c.l.b16 %v376
    %v443 = vunpack.c.h.b16 %v376
    %v444 = vunpack.c.l.b16 %v377
    %v445 = vunpack.c.h.b16 %v377
    %v446 = vunpack.c.l.b16 %v378
    %v447 = vunpack.c.h.b16 %v378
    %v448 = vunpack.c.l.b16 %v379
    %v449 = vunpack.c.h.b16 %v379
    %v450 = vunpack.c.l.b16 %v380
    %v451 = vunpack.c.h.b16 %v380
    %v452 = vunpack.c.l.b16 %v381
    %v453 = vunpack.c.h.b16 %v381
    %v454 = vunpack.c.l.b16 %v382
    %v455 = vunpack.c.h.b16 %v382
    %v456 = vunpack.c.l.b16 %v383
    %v457 = vunpack.c.h.b16 %v383
    %v458 = vunpack.c.l.b16 %v384
    %v459 = vunpack.c.h.b16 %v384
    %v460 = vunpack.c.l.b16 %v385
    %v461 = vunpack.c.h.b16 %v385
    %v462 = vunpack.c.l.b16 %v386
    %v463 = vunpack.c.h.b16 %v386
    %v464 = vunpack.c.l.b16 %v387
    %v465 = vunpack.c.h.b16 %v387
    %v466 = vunpack.c.l.b16 %v388
    %v467 = vunpack.c.h.b16 %v388
    %v468 = vunpack.c.l.b16 %v389
    %v469 = vunpack.c.h.b16 %v389
    %v470 = vunpack.c.l.b16 %v390
    %v471 = vunpack.c.h.b16 %v390
    %v472 = vunpack.c.l.b16 %v391
    %v473 = vunpack.c.h.b16 %v391
    %v474 = vunpack.c.l.b16 %v392
    %v475 = vunpack.c.h.b16 %v392
    %v476 = vunpack.c.l.b16 %v393
    %v477 = vunpack.c.h.b16 %v393
    %v478 = vunpack.c.l.b16 %v394
    %v479 = vunpack.c.h.b16 %v394
    %v480 = vunpack.c.l.b16 %v395
    %v481 = vunpack.c.h.b16 %v395
    %v482 = vunpack.c.l.b16 %v396
    %v483 = vunpack.c.h.b16 %v396
    %v484 = vunpack.c.l.b16 %v397
    %v485 = vunpack.c.h.b16 %v397
    %v486 = vunpack.c.l.b16 %v398
    %v487 = vunpack.c.h.b16 %v398
    %v488 = vunpack.c.l.b16 %v399
    %v489 = vunpack.c.h.b16 %v399
    %v490 = vunpack.c.l.b16 %v400
    %v491 = vunpack.c.h.b16 %v400
    %v492 = vunpack.c.l.b16 %v401
    %v493 = vunpack.c.h.b16 %v401
    %v494 = vunpack.c.l.b16 %v402
    %v495 = vunpack.c.h.b16 %v402
    %v496 = vunpack.c.l.b16 %v403
    %v497 = vunpack.c.h.b16 %v403
    %v498 = vunpack.c.l.b16 %v404
    %v499 = vunpack.c.h.b16 %v404
    %v500 = vunpack.c.l.b16 %v405
    %v501 = vunpack.c.h.b16 %v405
    %v502 = vpack.c.b16 %v440, %v438
    %v503 = vpack.c.b16 %v441, %v439
    %v504 = vpack.c.b16 %v444, %v442
    %v505 = vpack.c.b16 %v445, %v443
    %v506 = vpack.c.b16 %v448, %v446
    %v507 = vpack.c.b16 %v449, %v447
    %v508 = vpack.c.b16 %v452, %v450
    %v509 = vpack.c.b16 %v453, %v451
    %v510 = vpack.c.b16 %v456, %v454
    %v511 = vpack.c.b16 %v457, %v455
    %v512 = vpack.c.b16 %v460, %v458
    %v513 = vpack.c.b16 %v461, %v459
    %v514 = vpack.c.b16 %v464, %v462
    %v515 = vpack.c.b16 %v465, %v463
    %v516 = vpack.c.b16 %v468, %v466
    %v517 = vpack.c.b16 %v469, %v467
    %v518 = vpack.c.b16 %v472, %v470
    %v519 = vpack.c.b16 %v473, %v471
    %v520 = vpack.c.b16 %v476, %v474
    %v521 = vpack.c.b16 %v477, %v475
    %v522 = vpack.c.b16 %v480, %v478
    %v523 = vpack.c.b16 %v481, %v479
    %v524 = vpack.c.b16 %v484, %v482
    %v525 = vpack.c.b16 %v485, %v483
    %v526 = vpack.c.b16 %v488, %v486
    %v527 = vpack.c.b16 %v489, %v487
    %v528 = vpack.c.b16 %v492, %v490
    %v529 = vpack.c.b16 %v493, %v491
    %v530 = vpack.c.b16 %v496, %v494
    %v531 = vpack.c.b16 %v497, %v495
    %v532 = vpack.c.b16 %v500, %v498
    %v533 = vpack.c.b16 %v501, %v499
    %566 = vmatprep.subr.bf16.mxu0 %v503
    %567 = vmatpush1.bf16.msra.mxu0 %v502
    %568 = vmatprep.subr.bf16.mxu0 %v505
    %569 = vmatpush1.bf16.msra.mxu0 %v504
    %570 = vmatprep.subr.bf16.mxu0 %v507
    %571 = vmatpush1.bf16.msra.mxu0 %v506
    %572 = vmatprep.subr.bf16.mxu0 %v509
    %573 = vmatpush1.bf16.msra.mxu0 %v508
    %574 = vmatprep.subr.bf16.mxu0 %v511
    %575 = vmatpush1.bf16.msra.mxu0 %v510
    %576 = vmatprep.subr.bf16.mxu0 %v513
    %577 = vmatpush1.bf16.msra.mxu0 %v512
    %578 = vmatprep.subr.bf16.mxu0 %v515
    %579 = vmatpush1.bf16.msra.mxu0 %v514
    %580 = vmatprep.subr.bf16.mxu0 %v517
    %581 = vmatpush1.bf16.msra.mxu0 %v516
    %582 = vmatprep.subr.bf16.mxu0 %v519
    %583 = vmatpush1.bf16.msra.mxu0 %v518
    %584 = vmatprep.subr.bf16.mxu0 %v521
    %585 = vmatpush1.bf16.msra.mxu0 %v520
    %586 = vmatprep.subr.bf16.mxu0 %v523
    %587 = vmatpush1.bf16.msra.mxu0 %v522
    %588 = vmatprep.subr.bf16.mxu0 %v525
    %589 = vmatpush1.bf16.msra.mxu0 %v524
    %590 = vmatprep.subr.bf16.mxu0 %v527
    %591 = vmatpush1.bf16.msra.mxu0 %v526
    %592 = vmatprep.subr.bf16.mxu0 %v529
    %593 = vmatpush1.bf16.msra.mxu0 %v528
    %594 = vmatprep.subr.bf16.mxu0 %v531
    %595 = vmatpush1.bf16.msra.mxu0 %v530
    %596 = vmatprep.subr.bf16.mxu0 %v533
    %597 = vmatpush1.bf16.msra.mxu0 %v532
    %598 = vmatprep.mubr.bf16.mxu0 %v373
    %599 = vmatmul.mubr.bf16.gmra.mrb[0].mxu0 %v372
    %v600 = vpop.f32.mrb[0].mxu0
    %v601 = vadd.f32 0.0, %v600
    %v602 = vpop.f32.mrb[0].mxu0
    %v603 = vadd.f32 0.0, %v602
    %v604 = vpop.f32.mrb[0].mxu0
    %v605 = vadd.f32 0.0, %v604
    %v606 = vpop.f32.mrb[0].mxu0
    %v607 = vadd.f32 0.0, %v606
    %608 = vdwg.mxu0
    %v609 = vpack.c.bf16 %v605, %v601
    %v610 = vpack.c.bf16 %v607, %v603
    %v611 = vld [vmem:[%s4] sm:$0x3]
    %v614 = vunpack.c.l.s4 1966171168
    %v615 = vunpack.c.0.s8 %v614
    %v616 = vlaneseq
    %v617 = vshrl.u32 %v616, 7
    %v618 = vsub.s32 %v615, %v617
    %v619 = vrot.slane %v611, %v618
    %v620 = vcombine.high %v619, %v619
    %v622 = vunpack.c.l.s4 1966171168
    %v623 = vunpack.c.0.s8 %v622
    %v624 = vlaneseq
    %v625 = vshrl.u32 %v624, 7
    %v626 = vsub.s32 %v623, %v625
    %v627 = vrot.slane %v619, %v626
    %v629 = vunpack.c.l.s4 1966171168
    %v630 = vunpack.c.0.s8 %v629
    %v631 = vlaneseq
    %v632 = vshrl.u32 %v631, 7
    %v633 = vsub.s32 %v630, %v632
    %v634 = vrot.slane %v620, %v633
    %v636 = vpack.i.b16 %v627, %v627
    %v638 = vlaneseq
    %v639 = vshrl.u32 %v638, 7
    %v640 = vsub.s32 0, %v639
    %v641 = vrot.slane %v636, %v640
    %v643 = vpack.i.b16 %v634, %v634
    %v645 = vlaneseq
    %v646 = vshrl.u32 %v645, 7
    %v647 = vsub.s32 0, %v646
    %v648 = vrot.slane %v643, %v647
    %v649 = vadd.bf16 %v609, %v641
    %v650 = vadd.bf16 %v610, %v648
    %v651 = vmax.bf16 %v649, 0
    %v652 = vmax.bf16 %v650, 0
    %v653 = vld [vmem:[#allocation8] sm:$0xf]
    %v654 = vld [vmem:[#allocation8 + $0x4] sm:$0xf]
    %v655 = vld [vmem:[#allocation8 + $0x8] sm:$0xf]
    %v656 = vld [vmem:[#allocation8 + $0xc] sm:$0xf]
    %v657 = vld [vmem:[#allocation8 + $0x10] sm:$0xf]
    %v658 = vld [vmem:[#allocation8 + $0x14] sm:$0xf]
    %v659 = vld [vmem:[#allocation8 + $0x18] sm:$0xf]
    %v660 = vld [vmem:[#allocation8 + $0x1c] sm:$0xf]
    %v661 = vld [vmem:[#allocation8 + $0x20] sm:$0xf]
    %v662 = vld [vmem:[#allocation8 + $0x24] sm:$0xf]
    %v663 = vld [vmem:[#allocation8 + $0x28] sm:$0xf]
    %v664 = vld [vmem:[#allocation8 + $0x2c] sm:$0xf]
    %v665 = vld [vmem:[#allocation8 + $0x30] sm:$0xf]
    %v666 = vld [vmem:[#allocation8 + $0x34] sm:$0xf]
    %v667 = vld [vmem:[#allocation8 + $0x38] sm:$0xf]
    %v668 = vld [vmem:[#allocation8 + $0x3c] sm:$0xf]
    %v669 = vld [vmem:[#allocation8 + $0x40] sm:$0xf]
    %v670 = vld [vmem:[#allocation8 + $0x44] sm:$0xf]
    %v671 = vld [vmem:[#allocation8 + $0x48] sm:$0xf]
    %v672 = vld [vmem:[#allocation8 + $0x4c] sm:$0xf]
    %v673 = vld [vmem:[#allocation8 + $0x50] sm:$0xf]
    %v674 = vld [vmem:[#allocation8 + $0x54] sm:$0xf]
    %v675 = vld [vmem:[#allocation8 + $0x58] sm:$0xf]
    %v676 = vld [vmem:[#allocation8 + $0x5c] sm:$0xf]
    %v677 = vld [vmem:[#allocation8 + $0x60] sm:$0xf]
    %v678 = vld [vmem:[#allocation8 + $0x64] sm:$0xf]
    %v679 = vld [vmem:[#allocation8 + $0x68] sm:$0xf]
    %v680 = vld [vmem:[#allocation8 + $0x6c] sm:$0xf]
    %v681 = vld [vmem:[#allocation8 + $0x70] sm:$0xf]
    %v682 = vld [vmem:[#allocation8 + $0x74] sm:$0xf]
    %v683 = vld [vmem:[#allocation8 + $0x78] sm:$0xf]
    %v684 = vld [vmem:[#allocation8 + $0x7c] sm:$0xf]
    %v685 = vld [vmem:[%s6] sm:$0x1]
    %v687 = vlaneseq
    %v688 = vshrl.u32 %v687, 7
    %v689 = vsub.s32 0, %v688
    %v690 = vrot.slane %v685, %v689
    %v724 = vunpack.c.l.b16 %v653
    %v725 = vunpack.c.l.b16 %v654
    %v726 = vunpack.c.l.b16 %v655
    %v727 = vunpack.c.l.b16 %v656
    %v728 = vunpack.c.l.b16 %v657
    %v729 = vunpack.c.l.b16 %v658
    %v730 = vunpack.c.l.b16 %v659
    %v731 = vunpack.c.l.b16 %v660
    %v732 = vunpack.c.l.b16 %v661
    %v733 = vunpack.c.l.b16 %v662
    %v734 = vunpack.c.l.b16 %v663
    %v735 = vunpack.c.l.b16 %v664
    %v736 = vunpack.c.l.b16 %v665
    %v737 = vunpack.c.l.b16 %v666
    %v738 = vunpack.c.l.b16 %v667
    %v739 = vunpack.c.l.b16 %v668
    %v740 = vunpack.c.l.b16 %v669
    %v741 = vunpack.c.l.b16 %v670
    %v742 = vunpack.c.l.b16 %v671
    %v743 = vunpack.c.l.b16 %v672
    %v744 = vunpack.c.l.b16 %v673
    %v745 = vunpack.c.l.b16 %v674
    %v746 = vunpack.c.l.b16 %v675
    %v747 = vunpack.c.l.b16 %v676
    %v748 = vunpack.c.l.b16 %v677
    %v749 = vunpack.c.l.b16 %v678
    %v750 = vunpack.c.l.b16 %v679
    %v751 = vunpack.c.l.b16 %v680
    %v752 = vunpack.c.l.b16 %v681
    %v753 = vunpack.c.l.b16 %v682
    %v754 = vunpack.c.l.b16 %v683
    %v755 = vunpack.c.l.b16 %v684
    %v756 = vpack.c.b16 %v725, %v724
    %v757 = vpack.c.b16 %v727, %v726
    %v758 = vpack.c.b16 %v729, %v728
    %v759 = vpack.c.b16 %v731, %v730
    %v760 = vpack.c.b16 %v733, %v732
    %v761 = vpack.c.b16 %v735, %v734
    %v762 = vpack.c.b16 %v737, %v736
    %v763 = vpack.c.b16 %v739, %v738
    %v764 = vpack.c.b16 %v741, %v740
    %v765 = vpack.c.b16 %v743, %v742
    %v766 = vpack.c.b16 %v745, %v744
    %v767 = vpack.c.b16 %v747, %v746
    %v768 = vpack.c.b16 %v749, %v748
    %v769 = vpack.c.b16 %v751, %v750
    %v770 = vpack.c.b16 %v753, %v752
    %v771 = vpack.c.b16 %v755, %v754
    %788 = vmatprep.subr.bf16.mxu0 0
    %789 = vmatpush1.bf16.msra.mxu0 %v756
    %790 = vmatprep.subr.bf16.mxu0 0
    %791 = vmatpush1.bf16.msra.mxu0 %v757
    %792 = vmatprep.subr.bf16.mxu0 0
    %793 = vmatpush1.bf16.msra.mxu0 %v758
    %794 = vmatprep.subr.bf16.mxu0 0
    %795 = vmatpush1.bf16.msra.mxu0 %v759
    %796 = vmatprep.subr.bf16.mxu0 0
    %797 = vmatpush1.bf16.msra.mxu0 %v760
    %798 = vmatprep.subr.bf16.mxu0 0
    %799 = vmatpush1.bf16.msra.mxu0 %v761
    %800 = vmatprep.subr.bf16.mxu0 0
    %801 = vmatpush1.bf16.msra.mxu0 %v762
    %802 = vmatprep.subr.bf16.mxu0 0
    %803 = vmatpush1.bf16.msra.mxu0 %v763
    %804 = vmatprep.subr.bf16.mxu0 0
    %805 = vmatpush1.bf16.msra.mxu0 %v764
    %806 = vmatprep.subr.bf16.mxu0 0
    %807 = vmatpush1.bf16.msra.mxu0 %v765
    %808 = vmatprep.subr.bf16.mxu0 0
    %809 = vmatpush1.bf16.msra.mxu0 %v766
    %810 = vmatprep.subr.bf16.mxu0 0
    %811 = vmatpush1.bf16.msra.mxu0 %v767
    %812 = vmatprep.subr.bf16.mxu0 0
    %813 = vmatpush1.bf16.msra.mxu0 %v768
    %814 = vmatprep.subr.bf16.mxu0 0
    %815 = vmatpush1.bf16.msra.mxu0 %v769
    %816 = vmatprep.subr.bf16.mxu0 0
    %817 = vmatpush1.bf16.msra.mxu0 %v770
    %818 = vmatprep.subr.bf16.mxu0 0
    %819 = vmatpush1.bf16.msra.mxu0 %v771
    %820 = vmatprep.mubr.bf16.mxu0 %v652
    %821 = vmatmul.mubr.bf16.gmra.mrb[0].mxu0 %v651
    %v822 = vpop.f32.mrb[0].mxu0
    %v823 = vadd.f32 %v690, %v822
    %v824 = vpop.f32.mrb[0].mxu0
    %v825 = vpop.f32.mrb[0].mxu0
    %v826 = vadd.f32 %v690, %v825
    %v827 = vpop.f32.mrb[0].mxu0
    %828 = vdwg.mxu0
    %v829 = vpack.c.bf16 %v826, %v823
    %v831 = vunpack.c.l.b16 %v829
    %v832 = vunpack.c.h.b16 %v829
    %v833 = vpack.c.b16 %v831, %v831
    %v834 = vpack.c.b16 %v832, %v832
    %837 = vst [vmem:[#allocation10] sm:$0xf] %v833
    %838 = vst [vmem:[#allocation10 + $0x4] sm:$0xf] %v834
    // Predicated region
    $region46: #{tpu_custom_call.1} parent=1 // pred_check
      _
    $region47: #{tpu_custom_call.1} parent=1 // pred_check_branch
      %840 = sbr.rel (0) target = $region49
    $region48: #{tpu_custom_call.1} parent=1 // pred_region
      %s842 = ssub.s32 128, 128
      %843 = vsyncadd [#allocation4], %s842
      %s844 = sshll.u32 [#allocation10], 4
      %s845 = int_to_ptr.vmem [resolvable:$true] %s844
      %850 = dma.vmem_to_hbm [thread:$0]  %s845, 128, %s7, [#allocation4], 64, 64, 4
    $region49: #{tpu_custom_call.1} parent=1 // pred_fallthru
      _
    // Predicated region
    $region50: #{tpu_custom_call.1} parent=1 // pred_check
      _
    $region51: #{tpu_custom_call.1} parent=1 // pred_check_branch
      %852 = sbr.rel (0) target = $region53
    $region52: #{tpu_custom_call.1} parent=1 // pred_region
      %853 = dma.done [#allocation4], 128
    $region53: #{tpu_custom_call.1} parent=1 // pred_fallthru
      _
    %854 = vsyncpa [#allocation3], 1
    %855 = vsyncpa [#allocation6], 1
    %856 = vsyncpa [#allocation9], 1
    %857 = vsyncpa [#allocation4], 1

</llo_original>
